<compile_context>
chip_gen: v7x
topology: tpu7x:2x2x1
jax: 0.10.0
libtpu: 0.0.40
codegen_flags: <defaults>
</compile_context>

<pallas_src>
import jax
import jax.numpy as jnp
from jax import lax
from jax.experimental import pallas as pl
from jax.experimental.pallas import tpu as pltpu


def _round_up(x: int, m: int) -> int:
    return (x + m - 1) // m * m


def _vmem_bytes(shape, itemsize=4):
    """Bytes an f32 array of `shape` occupies in VMEM ((8,128)-tile padding)."""
    if len(shape) == 1:
        shape = (1,) + tuple(shape)
    lead = 1
    for d in shape[:-2]:
        lead *= d
    return lead * _round_up(shape[-2], 8) * _round_up(shape[-1], 128) * itemsize


def _sigmoid(x):
    # Single EUP op (tanh) instead of exp + reciprocal: sigmoid(x) = 0.5*(1+tanh(x/2)).
    return 0.5 * (jnp.tanh(0.5 * x) + 1.0)


def make_lstm_recurrence_kernel(seq_len: int, t_chunk: int, hidden: int,
                                needs_time_mask: bool):
    """Time-chunked LSTM recurrence + LAST_OUT linear readout.

    Refs per grid step (b, tc):
      xproj_ref : (T, B_BLK, 4H) f32   precomputed x@W_ih^T + (b_ih+b_hh), gates on lanes
      whh_ref   : (H, 4H)        f32   W_hh^T, gate blocks concatenated on lanes
      wout_ref  : (H, O)         f32   W_out^T
      bout_ref  : (1, O)         f32
      out_ref   : (B_BLK, O)     f32   written only at the last time chunk
      h_sc,c_sc : (B_BLK, H)     f32   recurrent state carried across time chunks
    """
    H = hidden

    def kernel(xproj_ref, whh_ref, wout_ref, bout_ref, out_ref, h_sc, c_sc):
        tc = pl.program_id(1)

        @pl.when(tc == 0)
        def _():
            h_sc[...] = jnp.zeros_like(h_sc)
            c_sc[...] = jnp.zeros_like(c_sc)

        def step(t, carry):
            h, c = carry
            # Fused-gate recurrent matmul: (B,H) x (H,4H) -> (B,4H).
            # W_hh^T is re-read from VMEM each step on purpose: vld slots have
            # slack under the MXU/EUP-bound step, while a register hoist of the
            # full weight would consume the whole vreg file and force spills.
            # TODO(synk): kernel dots use default MXU precision (wrapper/ref use
            # HIGHEST); for very large H exact-f32 parity may need a precision
            # knob or the gated bf16 variant.
            gates = xproj_ref[t] + jnp.dot(
                h, whh_ref[...], preferred_element_type=jnp.float32)
            i_g = _sigmoid(gates[:, 0 * H:1 * H])
            f_g = _sigmoid(gates[:, 1 * H:2 * H])
            g_g = jnp.tanh(gates[:, 2 * H:3 * H])
            o_g = _sigmoid(gates[:, 3 * H:4 * H])
            c_new = f_g * c + i_g * g_g
            h_new = o_g * jnp.tanh(c_new)
            if needs_time_mask:  # only traced if the time axis was padded
                valid = (tc * t_chunk + t) < seq_len
                h_new = jnp.where(valid, h_new, h)
                c_new = jnp.where(valid, c_new, c)
            return (h_new, c_new)

        unroll = t_chunk if t_chunk <= 16 else 8
        h, c = lax.fori_loop(0, t_chunk, step, (h_sc[...], c_sc[...]), unroll=unroll)
        h_sc[...] = h
        c_sc[...] = c

        @pl.when(tc == pl.num_programs(1) - 1)
        def _():
            out_ref[...] = (jnp.dot(h, wout_ref[...],
                                    preferred_element_type=jnp.float32)
                            + bout_ref[...])

    return kernel


def masked_lstm_forward(x, params, *, vmem_fraction=0.5):
    """x: (batch, seq, input_size) float32 -> (batch, output_size) float32."""
    B, S, I = x.shape
    O, H = params["w_out"].shape
    G = 4 * H
    f32 = jnp.float32
    hi = lax.Precision.HIGHEST

    # Apply the prune masks (weight_orig * weight_mask), as PyTorch does.
    w_ih = (params["w_ih"] * params["mask_ih"]).astype(f32)      # (4H, I)
    w_hh = (params["w_hh"] * params["mask_hh"]).astype(f32)      # (4H, H)
    w_out = (params["w_out"] * params["mask_out"]).astype(f32)   # (O, H)
    bias = (params["b_ih"] + params["b_hh"]).astype(f32)         # (4H,)
    b_out = params["b_out"].astype(f32).reshape(1, O)

    # Batch tiling: >=8 sublanes; aim for >=2 batch blocks so the "parallel"
    # axis can be split across the two TensorCores on v7x.
    B_BLK = min(128, max(8, _round_up((B + 1) // 2, 8)))
    B_pad = _round_up(B, B_BLK)

    # VMEM budget -> time-chunk size T and explicit scoped limit.
    try:
        vmem_cap = int(pltpu.get_tpu_info().vmem_capacity_bytes)
    except Exception:
        vmem_cap = 64 * 1024 * 1024          # assume the smallest (v7x per-core)
    budget = int(vmem_cap * vmem_fraction)   # leave headroom for compiler scratch
    fixed = (2 * _vmem_bytes((H, G))         # W_hh^T   (count inputs double-buffered)
             + 2 * _vmem_bytes((H, O))       # W_out^T
             + 2 * _vmem_bytes((1, O))       # b_out
             + 2 * _vmem_bytes((B_BLK, O))   # output block
             + 2 * _vmem_bytes((B_BLK, H)))  # h / c scratch
    per_t = _vmem_bytes((1, B_BLK, G))       # one timestep of the streamed X_proj
    T = int(max(1, min(S, (budget - fixed) // (2 * per_t))))
    S_pad = _round_up(S, T)
    footprint = fixed + 2 * T * per_t
    vmem_limit = int(min(vmem_cap, max(footprint + (8 << 20), 16 << 20)))

    # Hoisted input projection, time-major, gates concatenated on lanes.
    # (Transpose x itself -- I << 4H -- so X_proj needs no extra HBM pass.)
    x = x.astype(f32)
    if B_pad != B:
        x = jnp.pad(x, ((0, B_pad - B), (0, 0), (0, 0)))
    x_tm = jnp.transpose(x, (1, 0, 2))                             # (S, B_pad, I)
    xp = (jnp.dot(x_tm.reshape(S * B_pad, I), w_ih.T, precision=hi)
          + bias).reshape(S, B_pad, G)                             # (S, B_pad, 4H)
    if S_pad != S:
        xp = jnp.pad(xp, ((0, S_pad - S), (0, 0), (0, 0)))

    whh_t = w_hh.T                                                 # (H, 4H)
    wout_t = w_out.T                                               # (H, O)

    kernel = make_lstm_recurrence_kernel(S, T, H, needs_time_mask=(S_pad != S))

    grid = (B_pad // B_BLK, S_pad // T)
    out = pl.pallas_call(
        kernel,
        out_shape=jax.ShapeDtypeStruct((B_pad, O), f32),
        grid=grid,
        in_specs=[
            # Streamed per-time-chunk projection block (double-buffered by Pallas).
            pl.BlockSpec((T, B_BLK, G), lambda b, tc: (tc, b, 0)),
            pl.BlockSpec((H, G), lambda b, tc: (0, 0)),
            pl.BlockSpec((H, O), lambda b, tc: (0, 0)),
            pl.BlockSpec((1, O), lambda b, tc: (0, 0)),
        ],
        out_specs=pl.BlockSpec((B_BLK, O), lambda b, tc: (b, 0)),
        scratch_shapes=[pltpu.VMEM((B_BLK, H), f32),
                        pltpu.VMEM((B_BLK, H), f32)],
        compiler_params=pltpu.CompilerParams(
            dimension_semantics=("parallel", "arbitrary"),
            vmem_limit_bytes=vmem_limit),
    )(xp, whh_t, wout_t, b_out)
    return out[:B]


def init_params(key, input_size, hidden_size, output_size):
    """Deterministic init mimicking PyTorch's uniform(-1/sqrt(H), 1/sqrt(H))."""
    k = 1.0 / jnp.sqrt(jnp.float32(hidden_size))
    ks = jax.random.split(key, 6)
    u = lambda kk, shape: jax.random.uniform(kk, shape, jnp.float32, -k, k)
    return {
        "w_ih": u(ks[0], (4 * hidden_size, input_size)),
        "w_hh": u(ks[1], (4 * hidden_size, hidden_size)),
        "b_ih": u(ks[2], (4 * hidden_size,)),
        "b_hh": u(ks[3], (4 * hidden_size,)),
        "w_out": u(ks[4], (output_size, hidden_size)),
        "b_out": u(ks[5], (output_size,)),
        # prune.custom_from_mask masks (all ones in __init__):
        "mask_ih": jnp.ones((4 * hidden_size, input_size), jnp.float32),
        "mask_hh": jnp.ones((4 * hidden_size, hidden_size), jnp.float32),
        "mask_out": jnp.ones((output_size, hidden_size), jnp.float32),
    }


def reference_forward(x, params):
    """Pure-JAX reference (same math) for a sanity check."""
    B, S, I = x.shape
    O, H = params["w_out"].shape
    hi = lax.Precision.HIGHEST
    w_ih = params["w_ih"] * params["mask_ih"]
    w_hh = params["w_hh"] * params["mask_hh"]
    w_out = params["w_out"] * params["mask_out"]
    bias = params["b_ih"] + params["b_hh"]

    def step(carry, x_t):
        h, c = carry
        gates = (jnp.dot(x_t, w_ih.T, precision=hi)
                 + jnp.dot(h, w_hh.T, precision=hi) + bias)
        i_g = jax.nn.sigmoid(gates[:, 0 * H:1 * H])
        f_g = jax.nn.sigmoid(gates[:, 1 * H:2 * H])
        g_g = jnp.tanh(gates[:, 2 * H:3 * H])
        o_g = jax.nn.sigmoid(gates[:, 3 * H:4 * H])
        c = f_g * c + i_g * g_g
        h = o_g * jnp.tanh(c)
        return (h, c), None

    (h_last, _), _ = lax.scan(step,
                              (jnp.zeros((B, H)), jnp.zeros((B, H))),
                              jnp.transpose(x, (1, 0, 2)))
    return jnp.dot(h_last, w_out.T, precision=hi) + params["b_out"]


if __name__ == "__main__":
    batch, seq, input_size, hidden_size, output_size = 2, 8, 4, 32, 8

    key = jax.random.PRNGKey(0)
    k_x, k_p = jax.random.split(key)
    x = jax.random.normal(k_x, (batch, seq, input_size), jnp.float32)
    params = init_params(k_p, input_size, hidden_size, output_size)

    out = masked_lstm_forward(x, params)
    out = jax.block_until_ready(out)

    ref = reference_forward(x, params)
    assert out.shape == (batch, output_size)
    assert jnp.allclose(out, ref, atol=1e-4, rtol=1e-4), "mismatch vs JAX reference"

    print("KERNEL_OK")
</pallas_src>

<mosaic_0001>
module attributes {stable_mosaic.version = 11 : i64} {
  func.func @kernel(%arg0: i32, %arg1: i32, %arg2: memref<8x8x128xf32, #tpu.memory_space<vmem>>, %arg3: memref<32x128xf32, #tpu.memory_space<vmem>>, %arg4: memref<32x8xf32, #tpu.memory_space<vmem>>, %arg5: memref<1x8xf32, #tpu.memory_space<vmem>>, %arg6: memref<8x8xf32, #tpu.memory_space<vmem>>, %arg7: memref<8x32xf32, #tpu.memory_space<vmem>>, %arg8: memref<8x32xf32, #tpu.memory_space<vmem>>) attributes {dimension_semantics = [#tpu.dimension_semantics<parallel>, #tpu.dimension_semantics<arbitrary>], iteration_bounds = array<i64: 1, 1>, scalar_prefetch = 0 : i64, scratch_operands = 2 : i64, tpu.core_type = #tpu.core_type<tc>, window_params = [{transform_indices = @transform_0, window_bounds = array<i64: 8, 8, 128>}, {pipeline_mode = #tpu.pipeline_mode<synchronous>, transform_indices = @transform_1, window_bounds = array<i64: 32, 128>}, {pipeline_mode = #tpu.pipeline_mode<synchronous>, transform_indices = @transform_2, window_bounds = array<i64: 32, 8>}, {pipeline_mode = #tpu.pipeline_mode<synchronous>, transform_indices = @transform_3, window_bounds = array<i64: 1, 8>}, {transform_indices = @transform_4, window_bounds = array<i64: 8, 8>}]} {
    %c0_i32 = arith.constant 0 : i32
    %0 = arith.cmpi eq, %arg1, %c0_i32 : i32
    %1 = arith.extui %0 : i1 to i32
    %c0_i32_0 = arith.constant 0 : i32
    %2 = arith.cmpi ne, %1, %c0_i32_0 : i32
    scf.if %2 {
      %cst_122 = arith.constant 0.000000e+00 : f32
      %306 = vector.broadcast %cst_122 : f32 to vector<8x32xf32>
      %c0_123 = arith.constant 0 : index
      %c0_124 = arith.constant 0 : index
      %307 = vector.load %arg7[%c0_123, %c0_124] : memref<8x32xf32, #tpu.memory_space<vmem>>, vector<8x32xf32>
      tpu.vector_store %arg7[%c0_123, %c0_124], %306 {strides = array<i32>} : memref<8x32xf32, #tpu.memory_space<vmem>>, vector<8x32xf32>,
      %cst_125 = arith.constant 0.000000e+00 : f32
      %308 = vector.broadcast %cst_125 : f32 to vector<8x32xf32>
      %c0_126 = arith.constant 0 : index
      %c0_127 = arith.constant 0 : index
      %309 = vector.load %arg8[%c0_126, %c0_127] : memref<8x32xf32, #tpu.memory_space<vmem>>, vector<8x32xf32>
      tpu.vector_store %arg8[%c0_126, %c0_127], %308 {strides = array<i32>} : memref<8x32xf32, #tpu.memory_space<vmem>>, vector<8x32xf32>,
    } else {
    }
    %c0 = arith.constant 0 : index
    %c0_1 = arith.constant 0 : index
    %3 = vector.load %arg7[%c0, %c0_1] : memref<8x32xf32, #tpu.memory_space<vmem>>, vector<8x32xf32>
    %c0_2 = arith.constant 0 : index
    %c0_3 = arith.constant 0 : index
    %4 = vector.load %arg8[%c0_2, %c0_3] : memref<8x32xf32, #tpu.memory_space<vmem>>, vector<8x32xf32>
    %c0_i32_4 = arith.constant 0 : i32
    %5 = arith.index_cast %c0_i32_4 : i32 to index
    %c0_5 = arith.constant 0 : index
    %c0_6 = arith.constant 0 : index
    %6 = vector.load %arg2[%5, %c0_5, %c0_6] : memref<8x8x128xf32, #tpu.memory_space<vmem>>, vector<1x8x128xf32>
    %7 = vector.shape_cast %6 : vector<1x8x128xf32> to vector<8x128xf32>
    %c0_7 = arith.constant 0 : index
    %c0_8 = arith.constant 0 : index
    %8 = vector.load %arg3[%c0_7, %c0_8] : memref<32x128xf32, #tpu.memory_space<vmem>>, vector<32x128xf32>
    %cst = arith.constant dense<0.000000e+00> : vector<8x128xf32>
    %9 = tpu.matmul %3, %8, %cst {dimension_numbers = #tpu.dot_dimension_numbers<[1], [0], [0], [1], [0, 0, 1, 1], [], []>} : vector<8x32xf32>, vector<32x128xf32>, vector<8x128xf32> -> vector<8x128xf32>
    %10 = arith.addf %7, %9 : vector<8x128xf32>
    %11 = vector.extract_strided_slice %10 {offsets = [0, 0], sizes = [8, 32], strides = [1, 1]} : vector<8x128xf32> to vector<8x32xf32>
    %cst_9 = arith.constant 5.000000e-01 : f32
    %12 = vector.broadcast %cst_9 : f32 to vector<8x32xf32>
    %13 = arith.mulf %12, %11 : vector<8x32xf32>
    %14 = math.tanh %13 : vector<8x32xf32>
    %cst_10 = arith.constant 1.000000e+00 : f32
    %15 = vector.broadcast %cst_10 : f32 to vector<8x32xf32>
    %16 = arith.addf %14, %15 : vector<8x32xf32>
    %cst_11 = arith.constant 5.000000e-01 : f32
    %17 = vector.broadcast %cst_11 : f32 to vector<8x32xf32>
    %18 = arith.mulf %17, %16 : vector<8x32xf32>
    %19 = vector.extract_strided_slice %10 {offsets = [0, 32], sizes = [8, 32], strides = [1, 1]} : vector<8x128xf32> to vector<8x32xf32>
    %cst_12 = arith.constant 5.000000e-01 : f32
    %20 = vector.broadcast %cst_12 : f32 to vector<8x32xf32>
    %21 = arith.mulf %20, %19 : vector<8x32xf32>
    %22 = math.tanh %21 : vector<8x32xf32>
    %cst_13 = arith.constant 1.000000e+00 : f32
    %23 = vector.broadcast %cst_13 : f32 to vector<8x32xf32>
    %24 = arith.addf %22, %23 : vector<8x32xf32>
    %cst_14 = arith.constant 5.000000e-01 : f32
    %25 = vector.broadcast %cst_14 : f32 to vector<8x32xf32>
    %26 = arith.mulf %25, %24 : vector<8x32xf32>
    %27 = vector.extract_strided_slice %10 {offsets = [0, 64], sizes = [8, 32], strides = [1, 1]} : vector<8x128xf32> to vector<8x32xf32>
    %28 = math.tanh %27 : vector<8x32xf32>
    %29 = vector.extract_strided_slice %10 {offsets = [0, 96], sizes = [8, 32], strides = [1, 1]} : vector<8x128xf32> to vector<8x32xf32>
    %cst_15 = arith.constant 5.000000e-01 : f32
    %30 = vector.broadcast %cst_15 : f32 to vector<8x32xf32>
    %31 = arith.mulf %30, %29 : vector<8x32xf32>
    %32 = math.tanh %31 : vector<8x32xf32>
    %cst_16 = arith.constant 1.000000e+00 : f32
    %33 = vector.broadcast %cst_16 : f32 to vector<8x32xf32>
    %34 = arith.addf %32, %33 : vector<8x32xf32>
    %cst_17 = arith.constant 5.000000e-01 : f32
    %35 = vector.broadcast %cst_17 : f32 to vector<8x32xf32>
    %36 = arith.mulf %35, %34 : vector<8x32xf32>
    %37 = arith.mulf %26, %4 : vector<8x32xf32>
    %38 = arith.mulf %18, %28 : vector<8x32xf32>
    %39 = arith.addf %37, %38 : vector<8x32xf32>
    %40 = math.tanh %39 : vector<8x32xf32>
    %41 = arith.mulf %36, %40 : vector<8x32xf32>
    %c1_i32 = arith.constant 1 : i32
    %42 = arith.index_cast %c1_i32 : i32 to index
    %c0_18 = arith.constant 0 : index
    %c0_19 = arith.constant 0 : index
    %43 = vector.load %arg2[%42, %c0_18, %c0_19] : memref<8x8x128xf32, #tpu.memory_space<vmem>>, vector<1x8x128xf32>
    %44 = vector.shape_cast %43 : vector<1x8x128xf32> to vector<8x128xf32>
    %c0_20 = arith.constant 0 : index
    %c0_21 = arith.constant 0 : index
    %45 = vector.load %arg3[%c0_20, %c0_21] : memref<32x128xf32, #tpu.memory_space<vmem>>, vector<32x128xf32>
    %cst_22 = arith.constant dense<0.000000e+00> : vector<8x128xf32>
    %46 = tpu.matmul %41, %45, %cst_22 {dimension_numbers = #tpu.dot_dimension_numbers<[1], [0], [0], [1], [0, 0, 1, 1], [], []>} : vector<8x32xf32>, vector<32x128xf32>, vector<8x128xf32> -> vector<8x128xf32>
    %47 = arith.addf %44, %46 : vector<8x128xf32>
    %48 = vector.extract_strided_slice %47 {offsets = [0, 0], sizes = [8, 32], strides = [1, 1]} : vector<8x128xf32> to vector<8x32xf32>
    %cst_23 = arith.constant 5.000000e-01 : f32
    %49 = vector.broadcast %cst_23 : f32 to vector<8x32xf32>
    %50 = arith.mulf %49, %48 : vector<8x32xf32>
    %51 = math.tanh %50 : vector<8x32xf32>
    %cst_24 = arith.constant 1.000000e+00 : f32
    %52 = vector.broadcast %cst_24 : f32 to vector<8x32xf32>
    %53 = arith.addf %51, %52 : vector<8x32xf32>
    %cst_25 = arith.constant 5.000000e-01 : f32
    %54 = vector.broadcast %cst_25 : f32 to vector<8x32xf32>
    %55 = arith.mulf %54, %53 : vector<8x32xf32>
    %56 = vector.extract_strided_slice %47 {offsets = [0, 32], sizes = [8, 32], strides = [1, 1]} : vector<8x128xf32> to vector<8x32xf32>
    %cst_26 = arith.constant 5.000000e-01 : f32
    %57 = vector.broadcast %cst_26 : f32 to vector<8x32xf32>
    %58 = arith.mulf %57, %56 : vector<8x32xf32>
    %59 = math.tanh %58 : vector<8x32xf32>
    %cst_27 = arith.constant 1.000000e+00 : f32
    %60 = vector.broadcast %cst_27 : f32 to vector<8x32xf32>
    %61 = arith.addf %59, %60 : vector<8x32xf32>
    %cst_28 = arith.constant 5.000000e-01 : f32
    %62 = vector.broadcast %cst_28 : f32 to vector<8x32xf32>
    %63 = arith.mulf %62, %61 : vector<8x32xf32>
    %64 = vector.extract_strided_slice %47 {offsets = [0, 64], sizes = [8, 32], strides = [1, 1]} : vector<8x128xf32> to vector<8x32xf32>
    %65 = math.tanh %64 : vector<8x32xf32>
    %66 = vector.extract_strided_slice %47 {offsets = [0, 96], sizes = [8, 32], strides = [1, 1]} : vector<8x128xf32> to vector<8x32xf32>
    %cst_29 = arith.constant 5.000000e-01 : f32
    %67 = vector.broadcast %cst_29 : f32 to vector<8x32xf32>
    %68 = arith.mulf %67, %66 : vector<8x32xf32>
    %69 = math.tanh %68 : vector<8x32xf32>
    %cst_30 = arith.constant 1.000000e+00 : f32
    %70 = vector.broadcast %cst_30 : f32 to vector<8x32xf32>
    %71 = arith.addf %69, %70 : vector<8x32xf32>
    %cst_31 = arith.constant 5.000000e-01 : f32
    %72 = vector.broadcast %cst_31 : f32 to vector<8x32xf32>
    %73 = arith.mulf %72, %71 : vector<8x32xf32>
    %74 = arith.mulf %63, %39 : vector<8x32xf32>
    %75 = arith.mulf %55, %65 : vector<8x32xf32>
    %76 = arith.addf %74, %75 : vector<8x32xf32>
    %77 = math.tanh %76 : vector<8x32xf32>
    %78 = arith.mulf %73, %77 : vector<8x32xf32>
    %c2_i32 = arith.constant 2 : i32
    %79 = arith.index_cast %c2_i32 : i32 to index
    %c0_32 = arith.constant 0 : index
    %c0_33 = arith.constant 0 : index
    %80 = vector.load %arg2[%79, %c0_32, %c0_33] : memref<8x8x128xf32, #tpu.memory_space<vmem>>, vector<1x8x128xf32>
    %81 = vector.shape_cast %80 : vector<1x8x128xf32> to vector<8x128xf32>
    %c0_34 = arith.constant 0 : index
    %c0_35 = arith.constant 0 : index
    %82 = vector.load %arg3[%c0_34, %c0_35] : memref<32x128xf32, #tpu.memory_space<vmem>>, vector<32x128xf32>
    %cst_36 = arith.constant dense<0.000000e+00> : vector<8x128xf32>
    %83 = tpu.matmul %78, %82, %cst_36 {dimension_numbers = #tpu.dot_dimension_numbers<[1], [0], [0], [1], [0, 0, 1, 1], [], []>} : vector<8x32xf32>, vector<32x128xf32>, vector<8x128xf32> -> vector<8x128xf32>
    %84 = arith.addf %81, %83 : vector<8x128xf32>
    %85 = vector.extract_strided_slice %84 {offsets = [0, 0], sizes = [8, 32], strides = [1, 1]} : vector<8x128xf32> to vector<8x32xf32>
    %cst_37 = arith.constant 5.000000e-01 : f32
    %86 = vector.broadcast %cst_37 : f32 to vector<8x32xf32>
    %87 = arith.mulf %86, %85 : vector<8x32xf32>
    %88 = math.tanh %87 : vector<8x32xf32>
    %cst_38 = arith.constant 1.000000e+00 : f32
    %89 = vector.broadcast %cst_38 : f32 to vector<8x32xf32>
    %90 = arith.addf %88, %89 : vector<8x32xf32>
    %cst_39 = arith.constant 5.000000e-01 : f32
    %91 = vector.broadcast %cst_39 : f32 to vector<8x32xf32>
    %92 = arith.mulf %91, %90 : vector<8x32xf32>
    %93 = vector.extract_strided_slice %84 {offsets = [0, 32], sizes = [8, 32], strides = [1, 1]} : vector<8x128xf32> to vector<8x32xf32>
    %cst_40 = arith.constant 5.000000e-01 : f32
    %94 = vector.broadcast %cst_40 : f32 to vector<8x32xf32>
    %95 = arith.mulf %94, %93 : vector<8x32xf32>
    %96 = math.tanh %95 : vector<8x32xf32>
    %cst_41 = arith.constant 1.000000e+00 : f32
    %97 = vector.broadcast %cst_41 : f32 to vector<8x32xf32>
    %98 = arith.addf %96, %97 : vector<8x32xf32>
    %cst_42 = arith.constant 5.000000e-01 : f32
    %99 = vector.broadcast %cst_42 : f32 to vector<8x32xf32>
    %100 = arith.mulf %99, %98 : vector<8x32xf32>
    %101 = vector.extract_strided_slice %84 {offsets = [0, 64], sizes = [8, 32], strides = [1, 1]} : vector<8x128xf32> to vector<8x32xf32>
    %102 = math.tanh %101 : vector<8x32xf32>
    %103 = vector.extract_strided_slice %84 {offsets = [0, 96], sizes = [8, 32], strides = [1, 1]} : vector<8x128xf32> to vector<8x32xf32>
    %cst_43 = arith.constant 5.000000e-01 : f32
    %104 = vector.broadcast %cst_43 : f32 to vector<8x32xf32>
    %105 = arith.mulf %104, %103 : vector<8x32xf32>
    %106 = math.tanh %105 : vector<8x32xf32>
    %cst_44 = arith.constant 1.000000e+00 : f32
    %107 = vector.broadcast %cst_44 : f32 to vector<8x32xf32>
    %108 = arith.addf %106, %107 : vector<8x32xf32>
    %cst_45 = arith.constant 5.000000e-01 : f32
    %109 = vector.broadcast %cst_45 : f32 to vector<8x32xf32>
    %110 = arith.mulf %109, %108 : vector<8x32xf32>
    %111 = arith.mulf %100, %76 : vector<8x32xf32>
    %112 = arith.mulf %92, %102 : vector<8x32xf32>
    %113 = arith.addf %111, %112 : vector<8x32xf32>
    %114 = math.tanh %113 : vector<8x32xf32>
    %115 = arith.mulf %110, %114 : vector<8x32xf32>
    %c3_i32 = arith.constant 3 : i32
    %116 = arith.index_cast %c3_i32 : i32 to index
    %c0_46 = arith.constant 0 : index
    %c0_47 = arith.constant 0 : index
    %117 = vector.load %arg2[%116, %c0_46, %c0_47] : memref<8x8x128xf32, #tpu.memory_space<vmem>>, vector<1x8x128xf32>
    %118 = vector.shape_cast %117 : vector<1x8x128xf32> to vector<8x128xf32>
    %c0_48 = arith.constant 0 : index
    %c0_49 = arith.constant 0 : index
    %119 = vector.load %arg3[%c0_48, %c0_49] : memref<32x128xf32, #tpu.memory_space<vmem>>, vector<32x128xf32>
    %cst_50 = arith.constant dense<0.000000e+00> : vector<8x128xf32>
    %120 = tpu.matmul %115, %119, %cst_50 {dimension_numbers = #tpu.dot_dimension_numbers<[1], [0], [0], [1], [0, 0, 1, 1], [], []>} : vector<8x32xf32>, vector<32x128xf32>, vector<8x128xf32> -> vector<8x128xf32>
    %121 = arith.addf %118, %120 : vector<8x128xf32>
    %122 = vector.extract_strided_slice %121 {offsets = [0, 0], sizes = [8, 32], strides = [1, 1]} : vector<8x128xf32> to vector<8x32xf32>
    %cst_51 = arith.constant 5.000000e-01 : f32
    %123 = vector.broadcast %cst_51 : f32 to vector<8x32xf32>
    %124 = arith.mulf %123, %122 : vector<8x32xf32>
    %125 = math.tanh %124 : vector<8x32xf32>
    %cst_52 = arith.constant 1.000000e+00 : f32
    %126 = vector.broadcast %cst_52 : f32 to vector<8x32xf32>
    %127 = arith.addf %125, %126 : vector<8x32xf32>
    %cst_53 = arith.constant 5.000000e-01 : f32
    %128 = vector.broadcast %cst_53 : f32 to vector<8x32xf32>
    %129 = arith.mulf %128, %127 : vector<8x32xf32>
    %130 = vector.extract_strided_slice %121 {offsets = [0, 32], sizes = [8, 32], strides = [1, 1]} : vector<8x128xf32> to vector<8x32xf32>
    %cst_54 = arith.constant 5.000000e-01 : f32
    %131 = vector.broadcast %cst_54 : f32 to vector<8x32xf32>
    %132 = arith.mulf %131, %130 : vector<8x32xf32>
    %133 = math.tanh %132 : vector<8x32xf32>
    %cst_55 = arith.constant 1.000000e+00 : f32
    %134 = vector.broadcast %cst_55 : f32 to vector<8x32xf32>
    %135 = arith.addf %133, %134 : vector<8x32xf32>
    %cst_56 = arith.constant 5.000000e-01 : f32
    %136 = vector.broadcast %cst_56 : f32 to vector<8x32xf32>
    %137 = arith.mulf %136, %135 : vector<8x32xf32>
    %138 = vector.extract_strided_slice %121 {offsets = [0, 64], sizes = [8, 32], strides = [1, 1]} : vector<8x128xf32> to vector<8x32xf32>
    %139 = math.tanh %138 : vector<8x32xf32>
    %140 = vector.extract_strided_slice %121 {offsets = [0, 96], sizes = [8, 32], strides = [1, 1]} : vector<8x128xf32> to vector<8x32xf32>
    %cst_57 = arith.constant 5.000000e-01 : f32
    %141 = vector.broadcast %cst_57 : f32 to vector<8x32xf32>
    %142 = arith.mulf %141, %140 : vector<8x32xf32>
    %143 = math.tanh %142 : vector<8x32xf32>
    %cst_58 = arith.constant 1.000000e+00 : f32
    %144 = vector.broadcast %cst_58 : f32 to vector<8x32xf32>
    %145 = arith.addf %143, %144 : vector<8x32xf32>
    %cst_59 = arith.constant 5.000000e-01 : f32
    %146 = vector.broadcast %cst_59 : f32 to vector<8x32xf32>
    %147 = arith.mulf %146, %145 : vector<8x32xf32>
    %148 = arith.mulf %137, %113 : vector<8x32xf32>
    %149 = arith.mulf %129, %139 : vector<8x32xf32>
    %150 = arith.addf %148, %149 : vector<8x32xf32>
    %151 = math.tanh %150 : vector<8x32xf32>
    %152 = arith.mulf %147, %151 : vector<8x32xf32>
    %c4_i32 = arith.constant 4 : i32
    %153 = arith.index_cast %c4_i32 : i32 to index
    %c0_60 = arith.constant 0 : index
    %c0_61 = arith.constant 0 : index
    %154 = vector.load %arg2[%153, %c0_60, %c0_61] : memref<8x8x128xf32, #tpu.memory_space<vmem>>, vector<1x8x128xf32>
    %155 = vector.shape_cast %154 : vector<1x8x128xf32> to vector<8x128xf32>
    %c0_62 = arith.constant 0 : index
    %c0_63 = arith.constant 0 : index
    %156 = vector.load %arg3[%c0_62, %c0_63] : memref<32x128xf32, #tpu.memory_space<vmem>>, vector<32x128xf32>
    %cst_64 = arith.constant dense<0.000000e+00> : vector<8x128xf32>
    %157 = tpu.matmul %152, %156, %cst_64 {dimension_numbers = #tpu.dot_dimension_numbers<[1], [0], [0], [1], [0, 0, 1, 1], [], []>} : vector<8x32xf32>, vector<32x128xf32>, vector<8x128xf32> -> vector<8x128xf32>
    %158 = arith.addf %155, %157 : vector<8x128xf32>
    %159 = vector.extract_strided_slice %158 {offsets = [0, 0], sizes = [8, 32], strides = [1, 1]} : vector<8x128xf32> to vector<8x32xf32>
    %cst_65 = arith.constant 5.000000e-01 : f32
    %160 = vector.broadcast %cst_65 : f32 to vector<8x32xf32>
    %161 = arith.mulf %160, %159 : vector<8x32xf32>
    %162 = math.tanh %161 : vector<8x32xf32>
    %cst_66 = arith.constant 1.000000e+00 : f32
    %163 = vector.broadcast %cst_66 : f32 to vector<8x32xf32>
    %164 = arith.addf %162, %163 : vector<8x32xf32>
    %cst_67 = arith.constant 5.000000e-01 : f32
    %165 = vector.broadcast %cst_67 : f32 to vector<8x32xf32>
    %166 = arith.mulf %165, %164 : vector<8x32xf32>
    %167 = vector.extract_strided_slice %158 {offsets = [0, 32], sizes = [8, 32], strides = [1, 1]} : vector<8x128xf32> to vector<8x32xf32>
    %cst_68 = arith.constant 5.000000e-01 : f32
    %168 = vector.broadcast %cst_68 : f32 to vector<8x32xf32>
    %169 = arith.mulf %168, %167 : vector<8x32xf32>
    %170 = math.tanh %169 : vector<8x32xf32>
    %cst_69 = arith.constant 1.000000e+00 : f32
    %171 = vector.broadcast %cst_69 : f32 to vector<8x32xf32>
    %172 = arith.addf %170, %171 : vector<8x32xf32>
    %cst_70 = arith.constant 5.000000e-01 : f32
    %173 = vector.broadcast %cst_70 : f32 to vector<8x32xf32>
    %174 = arith.mulf %173, %172 : vector<8x32xf32>
    %175 = vector.extract_strided_slice %158 {offsets = [0, 64], sizes = [8, 32], strides = [1, 1]} : vector<8x128xf32> to vector<8x32xf32>
    %176 = math.tanh %175 : vector<8x32xf32>
    %177 = vector.extract_strided_slice %158 {offsets = [0, 96], sizes = [8, 32], strides = [1, 1]} : vector<8x128xf32> to vector<8x32xf32>
    %cst_71 = arith.constant 5.000000e-01 : f32
    %178 = vector.broadcast %cst_71 : f32 to vector<8x32xf32>
    %179 = arith.mulf %178, %177 : vector<8x32xf32>
    %180 = math.tanh %179 : vector<8x32xf32>
    %cst_72 = arith.constant 1.000000e+00 : f32
    %181 = vector.broadcast %cst_72 : f32 to vector<8x32xf32>
    %182 = arith.addf %180, %181 : vector<8x32xf32>
    %cst_73 = arith.constant 5.000000e-01 : f32
    %183 = vector.broadcast %cst_73 : f32 to vector<8x32xf32>
    %184 = arith.mulf %183, %182 : vector<8x32xf32>
    %185 = arith.mulf %174, %150 : vector<8x32xf32>
    %186 = arith.mulf %166, %176 : vector<8x32xf32>
    %187 = arith.addf %185, %186 : vector<8x32xf32>
    %188 = math.tanh %187 : vector<8x32xf32>
    %189 = arith.mulf %184, %188 : vector<8x32xf32>
    %c5_i32 = arith.constant 5 : i32
    %190 = arith.index_cast %c5_i32 : i32 to index
    %c0_74 = arith.constant 0 : index
    %c0_75 = arith.constant 0 : index
    %191 = vector.load %arg2[%190, %c0_74, %c0_75] : memref<8x8x128xf32, #tpu.memory_space<vmem>>, vector<1x8x128xf32>
    %192 = vector.shape_cast %191 : vector<1x8x128xf32> to vector<8x128xf32>
    %c0_76 = arith.constant 0 : index
    %c0_77 = arith.constant 0 : index
    %193 = vector.load %arg3[%c0_76, %c0_77] : memref<32x128xf32, #tpu.memory_space<vmem>>, vector<32x128xf32>
    %cst_78 = arith.constant dense<0.000000e+00> : vector<8x128xf32>
    %194 = tpu.matmul %189, %193, %cst_78 {dimension_numbers = #tpu.dot_dimension_numbers<[1], [0], [0], [1], [0, 0, 1, 1], [], []>} : vector<8x32xf32>, vector<32x128xf32>, vector<8x128xf32> -> vector<8x128xf32>
    %195 = arith.addf %192, %194 : vector<8x128xf32>
    %196 = vector.extract_strided_slice %195 {offsets = [0, 0], sizes = [8, 32], strides = [1, 1]} : vector<8x128xf32> to vector<8x32xf32>
    %cst_79 = arith.constant 5.000000e-01 : f32
    %197 = vector.broadcast %cst_79 : f32 to vector<8x32xf32>
    %198 = arith.mulf %197, %196 : vector<8x32xf32>
    %199 = math.tanh %198 : vector<8x32xf32>
    %cst_80 = arith.constant 1.000000e+00 : f32
    %200 = vector.broadcast %cst_80 : f32 to vector<8x32xf32>
    %201 = arith.addf %199, %200 : vector<8x32xf32>
    %cst_81 = arith.constant 5.000000e-01 : f32
    %202 = vector.broadcast %cst_81 : f32 to vector<8x32xf32>
    %203 = arith.mulf %202, %201 : vector<8x32xf32>
    %204 = vector.extract_strided_slice %195 {offsets = [0, 32], sizes = [8, 32], strides = [1, 1]} : vector<8x128xf32> to vector<8x32xf32>
    %cst_82 = arith.constant 5.000000e-01 : f32
    %205 = vector.broadcast %cst_82 : f32 to vector<8x32xf32>
    %206 = arith.mulf %205, %204 : vector<8x32xf32>
    %207 = math.tanh %206 : vector<8x32xf32>
    %cst_83 = arith.constant 1.000000e+00 : f32
    %208 = vector.broadcast %cst_83 : f32 to vector<8x32xf32>
    %209 = arith.addf %207, %208 : vector<8x32xf32>
    %cst_84 = arith.constant 5.000000e-01 : f32
    %210 = vector.broadcast %cst_84 : f32 to vector<8x32xf32>
    %211 = arith.mulf %210, %209 : vector<8x32xf32>
    %212 = vector.extract_strided_slice %195 {offsets = [0, 64], sizes = [8, 32], strides = [1, 1]} : vector<8x128xf32> to vector<8x32xf32>
    %213 = math.tanh %212 : vector<8x32xf32>
    %214 = vector.extract_strided_slice %195 {offsets = [0, 96], sizes = [8, 32], strides = [1, 1]} : vector<8x128xf32> to vector<8x32xf32>
    %cst_85 = arith.constant 5.000000e-01 : f32
    %215 = vector.broadcast %cst_85 : f32 to vector<8x32xf32>
    %216 = arith.mulf %215, %214 : vector<8x32xf32>
    %217 = math.tanh %216 : vector<8x32xf32>
    %cst_86 = arith.constant 1.000000e+00 : f32
    %218 = vector.broadcast %cst_86 : f32 to vector<8x32xf32>
    %219 = arith.addf %217, %218 : vector<8x32xf32>
    %cst_87 = arith.constant 5.000000e-01 : f32
    %220 = vector.broadcast %cst_87 : f32 to vector<8x32xf32>
    %221 = arith.mulf %220, %219 : vector<8x32xf32>
    %222 = arith.mulf %211, %187 : vector<8x32xf32>
    %223 = arith.mulf %203, %213 : vector<8x32xf32>
    %224 = arith.addf %222, %223 : vector<8x32xf32>
    %225 = math.tanh %224 : vector<8x32xf32>
    %226 = arith.mulf %221, %225 : vector<8x32xf32>
    %c6_i32 = arith.constant 6 : i32
    %227 = arith.index_cast %c6_i32 : i32 to index
    %c0_88 = arith.constant 0 : index
    %c0_89 = arith.constant 0 : index
    %228 = vector.load %arg2[%227, %c0_88, %c0_89] : memref<8x8x128xf32, #tpu.memory_space<vmem>>, vector<1x8x128xf32>
    %229 = vector.shape_cast %228 : vector<1x8x128xf32> to vector<8x128xf32>
    %c0_90 = arith.constant 0 : index
    %c0_91 = arith.constant 0 : index
    %230 = vector.load %arg3[%c0_90, %c0_91] : memref<32x128xf32, #tpu.memory_space<vmem>>, vector<32x128xf32>
    %cst_92 = arith.constant dense<0.000000e+00> : vector<8x128xf32>
    %231 = tpu.matmul %226, %230, %cst_92 {dimension_numbers = #tpu.dot_dimension_numbers<[1], [0], [0], [1], [0, 0, 1, 1], [], []>} : vector<8x32xf32>, vector<32x128xf32>, vector<8x128xf32> -> vector<8x128xf32>
    %232 = arith.addf %229, %231 : vector<8x128xf32>
    %233 = vector.extract_strided_slice %232 {offsets = [0, 0], sizes = [8, 32], strides = [1, 1]} : vector<8x128xf32> to vector<8x32xf32>
    %cst_93 = arith.constant 5.000000e-01 : f32
    %234 = vector.broadcast %cst_93 : f32 to vector<8x32xf32>
    %235 = arith.mulf %234, %233 : vector<8x32xf32>
    %236 = math.tanh %235 : vector<8x32xf32>
    %cst_94 = arith.constant 1.000000e+00 : f32
    %237 = vector.broadcast %cst_94 : f32 to vector<8x32xf32>
    %238 = arith.addf %236, %237 : vector<8x32xf32>
    %cst_95 = arith.constant 5.000000e-01 : f32
    %239 = vector.broadcast %cst_95 : f32 to vector<8x32xf32>
    %240 = arith.mulf %239, %238 : vector<8x32xf32>
    %241 = vector.extract_strided_slice %232 {offsets = [0, 32], sizes = [8, 32], strides = [1, 1]} : vector<8x128xf32> to vector<8x32xf32>
    %cst_96 = arith.constant 5.000000e-01 : f32
    %242 = vector.broadcast %cst_96 : f32 to vector<8x32xf32>
    %243 = arith.mulf %242, %241 : vector<8x32xf32>
    %244 = math.tanh %243 : vector<8x32xf32>
    %cst_97 = arith.constant 1.000000e+00 : f32
    %245 = vector.broadcast %cst_97 : f32 to vector<8x32xf32>
    %246 = arith.addf %244, %245 : vector<8x32xf32>
    %cst_98 = arith.constant 5.000000e-01 : f32
    %247 = vector.broadcast %cst_98 : f32 to vector<8x32xf32>
    %248 = arith.mulf %247, %246 : vector<8x32xf32>
    %249 = vector.extract_strided_slice %232 {offsets = [0, 64], sizes = [8, 32], strides = [1, 1]} : vector<8x128xf32> to vector<8x32xf32>
    %250 = math.tanh %249 : vector<8x32xf32>
    %251 = vector.extract_strided_slice %232 {offsets = [0, 96], sizes = [8, 32], strides = [1, 1]} : vector<8x128xf32> to vector<8x32xf32>
    %cst_99 = arith.constant 5.000000e-01 : f32
    %252 = vector.broadcast %cst_99 : f32 to vector<8x32xf32>
    %253 = arith.mulf %252, %251 : vector<8x32xf32>
    %254 = math.tanh %253 : vector<8x32xf32>
    %cst_100 = arith.constant 1.000000e+00 : f32
    %255 = vector.broadcast %cst_100 : f32 to vector<8x32xf32>
    %256 = arith.addf %254, %255 : vector<8x32xf32>
    %cst_101 = arith.constant 5.000000e-01 : f32
    %257 = vector.broadcast %cst_101 : f32 to vector<8x32xf32>
    %258 = arith.mulf %257, %256 : vector<8x32xf32>
    %259 = arith.mulf %248, %224 : vector<8x32xf32>
    %260 = arith.mulf %240, %250 : vector<8x32xf32>
    %261 = arith.addf %259, %260 : vector<8x32xf32>
    %262 = math.tanh %261 : vector<8x32xf32>
    %263 = arith.mulf %258, %262 : vector<8x32xf32>
    %c7_i32 = arith.constant 7 : i32
    %264 = arith.index_cast %c7_i32 : i32 to index
    %c0_102 = arith.constant 0 : index
    %c0_103 = arith.constant 0 : index
    %265 = vector.load %arg2[%264, %c0_102, %c0_103] : memref<8x8x128xf32, #tpu.memory_space<vmem>>, vector<1x8x128xf32>
    %266 = vector.shape_cast %265 : vector<1x8x128xf32> to vector<8x128xf32>
    %c0_104 = arith.constant 0 : index
    %c0_105 = arith.constant 0 : index
    %267 = vector.load %arg3[%c0_104, %c0_105] : memref<32x128xf32, #tpu.memory_space<vmem>>, vector<32x128xf32>
    %cst_106 = arith.constant dense<0.000000e+00> : vector<8x128xf32>
    %268 = tpu.matmul %263, %267, %cst_106 {dimension_numbers = #tpu.dot_dimension_numbers<[1], [0], [0], [1], [0, 0, 1, 1], [], []>} : vector<8x32xf32>, vector<32x128xf32>, vector<8x128xf32> -> vector<8x128xf32>
    %269 = arith.addf %266, %268 : vector<8x128xf32>
    %270 = vector.extract_strided_slice %269 {offsets = [0, 0], sizes = [8, 32], strides = [1, 1]} : vector<8x128xf32> to vector<8x32xf32>
    %cst_107 = arith.constant 5.000000e-01 : f32
    %271 = vector.broadcast %cst_107 : f32 to vector<8x32xf32>
    %272 = arith.mulf %271, %270 : vector<8x32xf32>
    %273 = math.tanh %272 : vector<8x32xf32>
    %cst_108 = arith.constant 1.000000e+00 : f32
    %274 = vector.broadcast %cst_108 : f32 to vector<8x32xf32>
    %275 = arith.addf %273, %274 : vector<8x32xf32>
    %cst_109 = arith.constant 5.000000e-01 : f32
    %276 = vector.broadcast %cst_109 : f32 to vector<8x32xf32>
    %277 = arith.mulf %276, %275 : vector<8x32xf32>
    %278 = vector.extract_strided_slice %269 {offsets = [0, 32], sizes = [8, 32], strides = [1, 1]} : vector<8x128xf32> to vector<8x32xf32>
    %cst_110 = arith.constant 5.000000e-01 : f32
    %279 = vector.broadcast %cst_110 : f32 to vector<8x32xf32>
    %280 = arith.mulf %279, %278 : vector<8x32xf32>
    %281 = math.tanh %280 : vector<8x32xf32>
    %cst_111 = arith.constant 1.000000e+00 : f32
    %282 = vector.broadcast %cst_111 : f32 to vector<8x32xf32>
    %283 = arith.addf %281, %282 : vector<8x32xf32>
    %cst_112 = arith.constant 5.000000e-01 : f32
    %284 = vector.broadcast %cst_112 : f32 to vector<8x32xf32>
    %285 = arith.mulf %284, %283 : vector<8x32xf32>
    %286 = vector.extract_strided_slice %269 {offsets = [0, 64], sizes = [8, 32], strides = [1, 1]} : vector<8x128xf32> to vector<8x32xf32>
    %287 = math.tanh %286 : vector<8x32xf32>
    %288 = vector.extract_strided_slice %269 {offsets = [0, 96], sizes = [8, 32], strides = [1, 1]} : vector<8x128xf32> to vector<8x32xf32>
    %cst_113 = arith.constant 5.000000e-01 : f32
    %289 = vector.broadcast %cst_113 : f32 to vector<8x32xf32>
    %290 = arith.mulf %289, %288 : vector<8x32xf32>
    %291 = math.tanh %290 : vector<8x32xf32>
    %cst_114 = arith.constant 1.000000e+00 : f32
    %292 = vector.broadcast %cst_114 : f32 to vector<8x32xf32>
    %293 = arith.addf %291, %292 : vector<8x32xf32>
    %cst_115 = arith.constant 5.000000e-01 : f32
    %294 = vector.broadcast %cst_115 : f32 to vector<8x32xf32>
    %295 = arith.mulf %294, %293 : vector<8x32xf32>
    %296 = arith.mulf %285, %261 : vector<8x32xf32>
    %297 = arith.mulf %277, %287 : vector<8x32xf32>
    %298 = arith.addf %296, %297 : vector<8x32xf32>
    %299 = math.tanh %298 : vector<8x32xf32>
    %300 = arith.mulf %295, %299 : vector<8x32xf32>
    %c8_i32 = arith.constant 8 : i32
    %c0_116 = arith.constant 0 : index
    %c0_117 = arith.constant 0 : index
    %301 = vector.load %arg7[%c0_116, %c0_117] : memref<8x32xf32, #tpu.memory_space<vmem>>, vector<8x32xf32>
    tpu.vector_store %arg7[%c0_116, %c0_117], %300 {strides = array<i32>} : memref<8x32xf32, #tpu.memory_space<vmem>>, vector<8x32xf32>,
    %c0_118 = arith.constant 0 : index
    %c0_119 = arith.constant 0 : index
    %302 = vector.load %arg8[%c0_118, %c0_119] : memref<8x32xf32, #tpu.memory_space<vmem>>, vector<8x32xf32>
    tpu.vector_store %arg8[%c0_118, %c0_119], %298 {strides = array<i32>} : memref<8x32xf32, #tpu.memory_space<vmem>>, vector<8x32xf32>,
    %c0_i32_120 = arith.constant 0 : i32
    %303 = arith.cmpi eq, %arg1, %c0_i32_120 : i32
    %304 = arith.extui %303 : i1 to i32
    %c0_i32_121 = arith.constant 0 : i32
    %305 = arith.cmpi ne, %304, %c0_i32_121 : i32
    scf.if %305 {
      %c0_122 = arith.constant 0 : index
      %c0_123 = arith.constant 0 : index
      %306 = vector.load %arg4[%c0_122, %c0_123] : memref<32x8xf32, #tpu.memory_space<vmem>>, vector<32x8xf32>
      %cst_124 = arith.constant dense<0.000000e+00> : vector<8x8xf32>
      %307 = tpu.matmul %300, %306, %cst_124 {dimension_numbers = #tpu.dot_dimension_numbers<[1], [0], [0], [1], [0, 0, 1, 1], [], []>} : vector<8x32xf32>, vector<32x8xf32>, vector<8x8xf32> -> vector<8x8xf32>
      %c0_125 = arith.constant 0 : index
      %c0_126 = arith.constant 0 : index
      %308 = vector.load %arg5[%c0_125, %c0_126] : memref<1x8xf32, #tpu.memory_space<vmem>>, vector<1x8xf32>
      %309 = vector.broadcast %308 : vector<1x8xf32> to vector<8x8xf32>
      %310 = arith.addf %307, %309 : vector<8x8xf32>
      %c0_127 = arith.constant 0 : index
      %c0_128 = arith.constant 0 : index
      %311 = vector.load %arg6[%c0_127, %c0_128] : memref<8x8xf32, #tpu.memory_space<vmem>>, vector<8x8xf32>
      tpu.vector_store %arg6[%c0_127, %c0_128], %310 {strides = array<i32>} : memref<8x8xf32, #tpu.memory_space<vmem>>, vector<8x8xf32>,
    } else {
    }
    return
  }
  func.func @transform_0(%arg0: i32, %arg1: i32) -> (i32, i32, i32) {
    %c0_i32 = arith.constant 0 : i32
    %c0_i32_0 = arith.constant 0 : i32
    return %arg1, %arg0, %c0_i32 : i32, i32, i32
  }
  func.func @transform_1(%arg0: i32, %arg1: i32) -> (i32, i32) {
    %c0_i32 = arith.constant 0 : i32
    %c0_i32_0 = arith.constant 0 : i32
    %c0_i32_1 = arith.constant 0 : i32
    return %c0_i32, %c0_i32_0 : i32, i32
  }
  func.func @transform_2(%arg0: i32, %arg1: i32) -> (i32, i32) {
    %c0_i32 = arith.constant 0 : i32
    %c0_i32_0 = arith.constant 0 : i32
    %c0_i32_1 = arith.constant 0 : i32
    return %c0_i32, %c0_i32_0 : i32, i32
  }
  func.func @transform_3(%arg0: i32, %arg1: i32) -> (i32, i32) {
    %c0_i32 = arith.constant 0 : i32
    %c0_i32_0 = arith.constant 0 : i32
    %c0_i32_1 = arith.constant 0 : i32
    return %c0_i32, %c0_i32_0 : i32, i32
  }
  func.func @transform_4(%arg0: i32, %arg1: i32) -> (i32, i32) {
    %c0_i32 = arith.constant 0 : i32
    %c0_i32_0 = arith.constant 0 : i32
    return %arg0, %c0_i32 : i32, i32
  }
}

</mosaic_0001>

<llo_original>
// kernel: tpu_custom_call.1
$region0: #{tpu_custom_call.1}
  #allocation0 [shape = 'u32[]', space=smem, size = 0x4, offset = 0x4, fixed_abs, tag = 'smem constant byte address 0x4 - core index']
  #allocation1 [shape = 'u32[144,128]{1,0:T(1,128)}', space=vmem, size = 0x12000, scoped, tag = 'internal scratch']
  #allocation2 [shape = 'f32[8,32]{1,0:T(8,128)}', space=vmem, size = 0x1000, scoped, tag = 'scratch operand']
  #allocation3 [shape = 'f32[8,32]{1,0:T(8,128)}', space=vmem, size = 0x1000, scoped, tag = 'scratch operand']
  %s0 = inlined_call_operand.hbm [shape: f32[8,8,128], index: 0, kind: input, shape index: {}]
  %s1 = inlined_call_operand.vmem [shape: f32[32,128], index: 1, kind: input, shape index: {}]
  %s2 = inlined_call_operand.vmem [shape: f32[32,8], index: 2, kind: input, shape index: {}]
  %s3 = inlined_call_operand.vmem [shape: f32[1,8], index: 3, kind: input, shape index: {}]
  %s4 = inlined_call_operand.hbm [shape: f32[8,8], index: 4, kind: output, shape index: {}]
  %s5 = sld [smem:[#allocation0]]
  $region38: #{tpu_custom_call.1} parent=0
    _
  %s7 = ssub.s32 1, %s5
  %s8 = scalar_select 0, %s7, %s5
  $region1: #{tpu_custom_call.1} parent=0
    #allocation4 [shape = 'u8[32768]{0}', space=vmem, size = 0x8000, scoped, tag = 'input window, operand 0, single buffered']
    #allocation5 [shape = 's32[1]{0}', space=sflag, size = 0x4, scoped, tag = 'scoped memory for tpu_custom_call.1']
    #allocation6 [shape = 's32[1]{0}', space=sflag, size = 0x4, scoped, tag = 'scoped memory for tpu_custom_call.1']
    #allocation7 [shape = 'u8[4096]{0}', space=vmem, size = 0x1000, scoped, tag = 'output window, operand 0, single buffered']
    %9 = vsyncpa [#allocation5], 0
    %10 = vsyncpa [#allocation6], 0
    // Predicated region
    $region2: #{tpu_custom_call.1} parent=1 // pred_check
      _
    $region3: #{tpu_custom_call.1} parent=1 // pred_check_branch
      %12 = sbr.rel (0) target = $region5
    $region4: #{tpu_custom_call.1} parent=1 // pred_region
      %s14 = ssub.s32 1024, 1024
      %15 = vsyncadd [#allocation5], %s14
      %s16 = sshll.u32 [#allocation4], 4
      %s17 = int_to_ptr.vmem [resolvable:$true] %s16
      %22 = dma.hbm_to_vmem [thread:$0]  %s0, 1024, %s17, [#allocation5], 128, 128, 8
    $region5: #{tpu_custom_call.1} parent=1 // pred_fallthru
      _
    // Predicated region
    $region6: #{tpu_custom_call.1} parent=1 // pred_check
      _
    $region7: #{tpu_custom_call.1} parent=1 // pred_check_branch
      %24 = sbr.rel (0) target = $region9
    $region8: #{tpu_custom_call.1} parent=1 // pred_region
      _
    $region9: #{tpu_custom_call.1} parent=1 // pred_fallthru
      _
    // Predicated region
    $region10: #{tpu_custom_call.1} parent=1 // pred_check
      _
    $region11: #{tpu_custom_call.1} parent=1 // pred_check_branch
      %26 = sbr.rel (0) target = $region13
    $region12: #{tpu_custom_call.1} parent=1 // pred_region
      _
    $region13: #{tpu_custom_call.1} parent=1 // pred_fallthru
      _
    // Predicated region
    $region14: #{tpu_custom_call.1} parent=1 // pred_check
      _
    $region15: #{tpu_custom_call.1} parent=1 // pred_check_branch
      %28 = sbr.rel (0) target = $region17
    $region16: #{tpu_custom_call.1} parent=1 // pred_region
      _
    $region17: #{tpu_custom_call.1} parent=1 // pred_fallthru
      _
    // Predicated region
    $region18: #{tpu_custom_call.1} parent=1 // pred_check
      _
    $region19: #{tpu_custom_call.1} parent=1 // pred_check_branch
      %30 = sbr.rel (0) target = $region21
    $region20: #{tpu_custom_call.1} parent=1 // pred_region
      %31 = dma.done [#allocation5], 1024
    $region21: #{tpu_custom_call.1} parent=1 // pred_fallthru
      _
    %p32 = scmp.eq.s32.totalorder 0, 0
    // Predicated region
    $region22: #{tpu_custom_call.1} parent=1 // pred_check
      %p33 = pneg %p32
    $region23: #{tpu_custom_call.1} parent=1 // pred_check_branch
      %35 = sbr.rel (%p33) target = $region25
    $region24: #{tpu_custom_call.1} parent=1 // pred_region
      %vm36 = vcmask 261120
      %37 = vst.msk [vmem:[#allocation2] sm:$0xff] %vm36, 0.0
      %38 = vst.msk [vmem:[#allocation3] sm:$0xff] %vm36, 0.0
    $region25: #{tpu_custom_call.1} parent=1 // pred_fallthru
      _
    %v39 = vld [vmem:[#allocation2] sm:$0xff]
    %v40 = vld [vmem:[#allocation3] sm:$0xff]
    %v41 = vld [vmem:[#allocation4] sm:$0xff]
    %v42 = vld [vmem:[%s1] sm:$0xff]
    %v43 = vld [vmem:[%s1 + $0x8] sm:$0xff]
    %v44 = vld [vmem:[%s1 + $0x10] sm:$0xff]
    %v45 = vld [vmem:[%s1 + $0x18] sm:$0xff]
    %vm46 = vcmask 261120
    %v48 = vsel %vm46, %v39, 0
    %50 = vmatprep.subr.mxu0 0.0
    %51 = vmatpush1.msra.mxu0 %v42
    %52 = vmatprep.subr.mxu0 0.0
    %53 = vmatpush1.msra.mxu0 %v43
    %54 = vmatprep.subr.mxu0 0.0
    %55 = vmatpush1.msra.mxu0 %v44
    %56 = vmatprep.subr.mxu0 0.0
    %57 = vmatpush1.msra.mxu0 %v45
    %58 = vmatprep.subr.mxu0 0.0
    %59 = vmatpush1.msra.mxu0 0.0
    %60 = vmatprep.subr.mxu0 0.0
    %61 = vmatpush1.msra.mxu0 0.0
    %62 = vmatprep.subr.mxu0 0.0
    %63 = vmatpush1.msra.mxu0 0.0
    %64 = vmatprep.subr.mxu0 0.0
    %65 = vmatpush1.msra.mxu0 0.0
    %66 = vmatprep.subr.mxu0 0.0
    %67 = vmatpush1.msra.mxu0 0.0
    %68 = vmatprep.subr.mxu0 0.0
    %69 = vmatpush1.msra.mxu0 0.0
    %70 = vmatprep.subr.mxu0 0.0
    %71 = vmatpush1.msra.mxu0 0.0
    %72 = vmatprep.subr.mxu0 0.0
    %73 = vmatpush1.msra.mxu0 0.0
    %74 = vmatprep.subr.mxu0 0.0
    %75 = vmatpush1.msra.mxu0 0.0
    %76 = vmatprep.subr.mxu0 0.0
    %77 = vmatpush1.msra.mxu0 0.0
    %78 = vmatprep.subr.mxu0 0.0
    %79 = vmatpush1.msra.mxu0 0.0
    %80 = vmatprep.subr.mxu0 0.0
    %81 = vmatpush1.msra.mxu0 0.0
    %82 = vmatprep.subr.mxu0 0.0
    %83 = vmatpush1.msra.mxu0 0.0
    %84 = vmatprep.subr.mxu0 0.0
    %85 = vmatpush1.msra.mxu0 0.0
    %86 = vmatprep.subr.mxu0 0.0
    %87 = vmatpush1.msra.mxu0 0.0
    %88 = vmatprep.subr.mxu0 0.0
    %89 = vmatpush1.msra.mxu0 0.0
    %90 = vmatprep.subr.mxu0 0.0
    %91 = vmatpush1.msra.mxu0 0.0
    %92 = vmatprep.subr.mxu0 0.0
    %93 = vmatpush1.msra.mxu0 0.0
    %94 = vmatprep.subr.mxu0 0.0
    %95 = vmatpush1.msra.mxu0 0.0
    %96 = vmatprep.subr.mxu0 0.0
    %97 = vmatpush1.msra.mxu0 0.0
    %98 = vmatprep.subr.mxu0 0.0
    %99 = vmatpush1.msra.mxu0 0.0
    %100 = vmatprep.subr.mxu0 0.0
    %101 = vmatpush1.msra.mxu0 0.0
    %102 = vmatprep.subr.mxu0 0.0
    %103 = vmatpush1.msra.mxu0 0.0
    %104 = vmatprep.subr.mxu0 0.0
    %105 = vmatpush1.msra.mxu0 0.0
    %106 = vmatprep.subr.mxu0 0.0
    %107 = vmatpush1.msra.mxu0 0.0
    %108 = vmatprep.subr.mxu0 0.0
    %109 = vmatpush1.msra.mxu0 0.0
    %110 = vmatprep.subr.mxu0 0.0
    %111 = vmatpush1.msra.mxu0 0.0
    %112 = vmatprep.subr.mxu0 0.0
    %113 = vmatpush1.msra.mxu0 0.0
    %114 = vmatprep.mubr.f32.mxu0 0.0
    %115 = vmatmul.mubr.f32.gmra.mrb[0].mxu0 %v48
    %v116 = vpop.f32.mrb[0].mxu0
    %v117 = vadd.f32 0.0, %v116
    %v118 = vpop.f32.mrb[0].mxu0
    %119 = vdwg.mxu0
    %v120 = vadd.f32 %v41, %v117
    %v121 = vmul.f32 %v120, 0.5
    %v122 = vtanh.pop %v121
    %v123 = vadd.f32 %v122, 1.0
    %v124 = vmul.f32 %v123, 0.5
    %v125 = vtanh.pop %v120
    %127 = vrot.lane.b32.xlu0 %v40, 32
    %v128 = vpop.permute.xlu0 %127
    %v130 = vmul.f32 %v124, %v128
    %132 = vrot.lane.b32.xlu0 %v125, 64
    %v133 = vpop.permute.xlu0 %132
    %v135 = vmul.f32 %v124, %v133
    %137 = vrot.lane.b32.xlu0 %v135, 32
    %v138 = vpop.permute.xlu0 %137
    %v140 = vadd.f32 %v130, %v138
    %v141 = vtanh.pop %v140
    %143 = vrot.lane.b32.xlu0 %v141, 64
    %v144 = vpop.permute.xlu0 %143
    %v146 = vmul.f32 %v124, %v144
    %s147 = scalar_lea.vmem [#allocation4], 8
    %v148 = vld [vmem:[%s147] sm:$0xff]
    %150 = vrot.lane.b32.xlu0 %v146, 32
    %v151 = vpop.permute.xlu0 %150
    %v152 = vsel %vm46, %v151, 0
    %154 = vmatprep.subr.mxu0 0.0
    %155 = vmatpush1.msra.mxu0 %v42
    %156 = vmatprep.subr.mxu0 0.0
    %157 = vmatpush1.msra.mxu0 %v43
    %158 = vmatprep.subr.mxu0 0.0
    %159 = vmatpush1.msra.mxu0 %v44
    %160 = vmatprep.subr.mxu0 0.0
    %161 = vmatpush1.msra.mxu0 %v45
    %162 = vmatprep.subr.mxu0 0.0
    %163 = vmatpush1.msra.mxu0 0.0
    %164 = vmatprep.subr.mxu0 0.0
    %165 = vmatpush1.msra.mxu0 0.0
    %166 = vmatprep.subr.mxu0 0.0
    %167 = vmatpush1.msra.mxu0 0.0
    %168 = vmatprep.subr.mxu0 0.0
    %169 = vmatpush1.msra.mxu0 0.0
    %170 = vmatprep.subr.mxu0 0.0
    %171 = vmatpush1.msra.mxu0 0.0
    %172 = vmatprep.subr.mxu0 0.0
    %173 = vmatpush1.msra.mxu0 0.0
    %174 = vmatprep.subr.mxu0 0.0
    %175 = vmatpush1.msra.mxu0 0.0
    %176 = vmatprep.subr.mxu0 0.0
    %177 = vmatpush1.msra.mxu0 0.0
    %178 = vmatprep.subr.mxu0 0.0
    %179 = vmatpush1.msra.mxu0 0.0
    %180 = vmatprep.subr.mxu0 0.0
    %181 = vmatpush1.msra.mxu0 0.0
    %182 = vmatprep.subr.mxu0 0.0
    %183 = vmatpush1.msra.mxu0 0.0
    %184 = vmatprep.subr.mxu0 0.0
    %185 = vmatpush1.msra.mxu0 0.0
    %186 = vmatprep.subr.mxu0 0.0
    %187 = vmatpush1.msra.mxu0 0.0
    %188 = vmatprep.subr.mxu0 0.0
    %189 = vmatpush1.msra.mxu0 0.0
    %190 = vmatprep.subr.mxu0 0.0
    %191 = vmatpush1.msra.mxu0 0.0
    %192 = vmatprep.subr.mxu0 0.0
    %193 = vmatpush1.msra.mxu0 0.0
    %194 = vmatprep.subr.mxu0 0.0
    %195 = vmatpush1.msra.mxu0 0.0
    %196 = vmatprep.subr.mxu0 0.0
    %197 = vmatpush1.msra.mxu0 0.0
    %198 = vmatprep.subr.mxu0 0.0
    %199 = vmatpush1.msra.mxu0 0.0
    %200 = vmatprep.subr.mxu0 0.0
    %201 = vmatpush1.msra.mxu0 0.0
    %202 = vmatprep.subr.mxu0 0.0
    %203 = vmatpush1.msra.mxu0 0.0
    %204 = vmatprep.subr.mxu0 0.0
    %205 = vmatpush1.msra.mxu0 0.0
    %206 = vmatprep.subr.mxu0 0.0
    %207 = vmatpush1.msra.mxu0 0.0
    %208 = vmatprep.subr.mxu0 0.0
    %209 = vmatpush1.msra.mxu0 0.0
    %210 = vmatprep.subr.mxu0 0.0
    %211 = vmatpush1.msra.mxu0 0.0
    %212 = vmatprep.subr.mxu0 0.0
    %213 = vmatpush1.msra.mxu0 0.0
    %214 = vmatprep.subr.mxu0 0.0
    %215 = vmatpush1.msra.mxu0 0.0
    %216 = vmatprep.subr.mxu0 0.0
    %217 = vmatpush1.msra.mxu0 0.0
    %218 = vmatprep.mubr.f32.mxu0 0.0
    %219 = vmatmul.mubr.f32.gmra.mrb[0].mxu0 %v152
    %v220 = vpop.f32.mrb[0].mxu0
    %v221 = vadd.f32 0.0, %v220
    %v222 = vpop.f32.mrb[0].mxu0
    %223 = vdwg.mxu0
    %v224 = vadd.f32 %v148, %v221
    %v225 = vmul.f32 %v224, 0.5
    %v226 = vtanh.pop %v225
    %v227 = vadd.f32 %v226, 1.0
    %v228 = vmul.f32 %v227, 0.5
    %v229 = vtanh.pop %v224
    %v230 = vmul.f32 %v228, %v140
    %232 = vrot.lane.b32.xlu0 %v229, 64
    %v233 = vpop.permute.xlu0 %232
    %v235 = vmul.f32 %v228, %v233
    %237 = vrot.lane.b32.xlu0 %v235, 32
    %v238 = vpop.permute.xlu0 %237
    %v240 = vadd.f32 %v230, %v238
    %v241 = vtanh.pop %v240
    %243 = vrot.lane.b32.xlu0 %v241, 64
    %v244 = vpop.permute.xlu0 %243
    %v246 = vmul.f32 %v228, %v244
    %s247 = scalar_lea.vmem [#allocation4], 16
    %v248 = vld [vmem:[%s247] sm:$0xff]
    %250 = vrot.lane.b32.xlu0 %v246, 32
    %v251 = vpop.permute.xlu0 %250
    %v252 = vsel %vm46, %v251, 0
    %254 = vmatprep.subr.mxu0 0.0
    %255 = vmatpush1.msra.mxu0 %v42
    %256 = vmatprep.subr.mxu0 0.0
    %257 = vmatpush1.msra.mxu0 %v43
    %258 = vmatprep.subr.mxu0 0.0
    %259 = vmatpush1.msra.mxu0 %v44
    %260 = vmatprep.subr.mxu0 0.0
    %261 = vmatpush1.msra.mxu0 %v45
    %262 = vmatprep.subr.mxu0 0.0
    %263 = vmatpush1.msra.mxu0 0.0
    %264 = vmatprep.subr.mxu0 0.0
    %265 = vmatpush1.msra.mxu0 0.0
    %266 = vmatprep.subr.mxu0 0.0
    %267 = vmatpush1.msra.mxu0 0.0
    %268 = vmatprep.subr.mxu0 0.0
    %269 = vmatpush1.msra.mxu0 0.0
    %270 = vmatprep.subr.mxu0 0.0
    %271 = vmatpush1.msra.mxu0 0.0
    %272 = vmatprep.subr.mxu0 0.0
    %273 = vmatpush1.msra.mxu0 0.0
    %274 = vmatprep.subr.mxu0 0.0
    %275 = vmatpush1.msra.mxu0 0.0
    %276 = vmatprep.subr.mxu0 0.0
    %277 = vmatpush1.msra.mxu0 0.0
    %278 = vmatprep.subr.mxu0 0.0
    %279 = vmatpush1.msra.mxu0 0.0
    %280 = vmatprep.subr.mxu0 0.0
    %281 = vmatpush1.msra.mxu0 0.0
    %282 = vmatprep.subr.mxu0 0.0
    %283 = vmatpush1.msra.mxu0 0.0
    %284 = vmatprep.subr.mxu0 0.0
    %285 = vmatpush1.msra.mxu0 0.0
    %286 = vmatprep.subr.mxu0 0.0
    %287 = vmatpush1.msra.mxu0 0.0
    %288 = vmatprep.subr.mxu0 0.0
    %289 = vmatpush1.msra.mxu0 0.0
    %290 = vmatprep.subr.mxu0 0.0
    %291 = vmatpush1.msra.mxu0 0.0
    %292 = vmatprep.subr.mxu0 0.0
    %293 = vmatpush1.msra.mxu0 0.0
    %294 = vmatprep.subr.mxu0 0.0
    %295 = vmatpush1.msra.mxu0 0.0
    %296 = vmatprep.subr.mxu0 0.0
    %297 = vmatpush1.msra.mxu0 0.0
    %298 = vmatprep.subr.mxu0 0.0
    %299 = vmatpush1.msra.mxu0 0.0
    %300 = vmatprep.subr.mxu0 0.0
    %301 = vmatpush1.msra.mxu0 0.0
    %302 = vmatprep.subr.mxu0 0.0
    %303 = vmatpush1.msra.mxu0 0.0
    %304 = vmatprep.subr.mxu0 0.0
    %305 = vmatpush1.msra.mxu0 0.0
    %306 = vmatprep.subr.mxu0 0.0
    %307 = vmatpush1.msra.mxu0 0.0
    %308 = vmatprep.subr.mxu0 0.0
    %309 = vmatpush1.msra.mxu0 0.0
    %310 = vmatprep.subr.mxu0 0.0
    %311 = vmatpush1.msra.mxu0 0.0
    %312 = vmatprep.subr.mxu0 0.0
    %313 = vmatpush1.msra.mxu0 0.0
    %314 = vmatprep.subr.mxu0 0.0
    %315 = vmatpush1.msra.mxu0 0.0
    %316 = vmatprep.subr.mxu0 0.0
    %317 = vmatpush1.msra.mxu0 0.0
    %318 = vmatprep.mubr.f32.mxu0 0.0
    %319 = vmatmul.mubr.f32.gmra.mrb[0].mxu0 %v252
    %v320 = vpop.f32.mrb[0].mxu0
    %v321 = vadd.f32 0.0, %v320
    %v322 = vpop.f32.mrb[0].mxu0
    %323 = vdwg.mxu0
    %v324 = vadd.f32 %v248, %v321
    %v325 = vmul.f32 %v324, 0.5
    %v326 = vtanh.pop %v325
    %v327 = vadd.f32 %v326, 1.0
    %v328 = vmul.f32 %v327, 0.5
    %v329 = vtanh.pop %v324
    %v330 = vmul.f32 %v328, %v240
    %332 = vrot.lane.b32.xlu0 %v329, 64
    %v333 = vpop.permute.xlu0 %332
    %v335 = vmul.f32 %v328, %v333
    %337 = vrot.lane.b32.xlu0 %v335, 32
    %v338 = vpop.permute.xlu0 %337
    %v340 = vadd.f32 %v330, %v338
    %v341 = vtanh.pop %v340
    %343 = vrot.lane.b32.xlu0 %v341, 64
    %v344 = vpop.permute.xlu0 %343
    %v346 = vmul.f32 %v328, %v344
    %s347 = scalar_lea.vmem [#allocation4], 24
    %v348 = vld [vmem:[%s347] sm:$0xff]
    %350 = vrot.lane.b32.xlu0 %v346, 32
    %v351 = vpop.permute.xlu0 %350
    %v352 = vsel %vm46, %v351, 0
    %354 = vmatprep.subr.mxu0 0.0
    %355 = vmatpush1.msra.mxu0 %v42
    %356 = vmatprep.subr.mxu0 0.0
    %357 = vmatpush1.msra.mxu0 %v43
    %358 = vmatprep.subr.mxu0 0.0
    %359 = vmatpush1.msra.mxu0 %v44
    %360 = vmatprep.subr.mxu0 0.0
    %361 = vmatpush1.msra.mxu0 %v45
    %362 = vmatprep.subr.mxu0 0.0
    %363 = vmatpush1.msra.mxu0 0.0
    %364 = vmatprep.subr.mxu0 0.0
    %365 = vmatpush1.msra.mxu0 0.0
    %366 = vmatprep.subr.mxu0 0.0
    %367 = vmatpush1.msra.mxu0 0.0
    %368 = vmatprep.subr.mxu0 0.0
    %369 = vmatpush1.msra.mxu0 0.0
    %370 = vmatprep.subr.mxu0 0.0
    %371 = vmatpush1.msra.mxu0 0.0
    %372 = vmatprep.subr.mxu0 0.0
    %373 = vmatpush1.msra.mxu0 0.0
    %374 = vmatprep.subr.mxu0 0.0
    %375 = vmatpush1.msra.mxu0 0.0
    %376 = vmatprep.subr.mxu0 0.0
    %377 = vmatpush1.msra.mxu0 0.0
    %378 = vmatprep.subr.mxu0 0.0
    %379 = vmatpush1.msra.mxu0 0.0
    %380 = vmatprep.subr.mxu0 0.0
    %381 = vmatpush1.msra.mxu0 0.0
    %382 = vmatprep.subr.mxu0 0.0
    %383 = vmatpush1.msra.mxu0 0.0
    %384 = vmatprep.subr.mxu0 0.0
    %385 = vmatpush1.msra.mxu0 0.0
    %386 = vmatprep.subr.mxu0 0.0
    %387 = vmatpush1.msra.mxu0 0.0
    %388 = vmatprep.subr.mxu0 0.0
    %389 = vmatpush1.msra.mxu0 0.0
    %390 = vmatprep.subr.mxu0 0.0
    %391 = vmatpush1.msra.mxu0 0.0
    %392 = vmatprep.subr.mxu0 0.0
    %393 = vmatpush1.msra.mxu0 0.0
    %394 = vmatprep.subr.mxu0 0.0
    %395 = vmatpush1.msra.mxu0 0.0
    %396 = vmatprep.subr.mxu0 0.0
    %397 = vmatpush1.msra.mxu0 0.0
    %398 = vmatprep.subr.mxu0 0.0
    %399 = vmatpush1.msra.mxu0 0.0
    %400 = vmatprep.subr.mxu0 0.0
    %401 = vmatpush1.msra.mxu0 0.0
    %402 = vmatprep.subr.mxu0 0.0
    %403 = vmatpush1.msra.mxu0 0.0
    %404 = vmatprep.subr.mxu0 0.0
    %405 = vmatpush1.msra.mxu0 0.0
    %406 = vmatprep.subr.mxu0 0.0
    %407 = vmatpush1.msra.mxu0 0.0
    %408 = vmatprep.subr.mxu0 0.0
    %409 = vmatpush1.msra.mxu0 0.0
    %410 = vmatprep.subr.mxu0 0.0
    %411 = vmatpush1.msra.mxu0 0.0
    %412 = vmatprep.subr.mxu0 0.0
    %413 = vmatpush1.msra.mxu0 0.0
    %414 = vmatprep.subr.mxu0 0.0
    %415 = vmatpush1.msra.mxu0 0.0
    %416 = vmatprep.subr.mxu0 0.0
    %417 = vmatpush1.msra.mxu0 0.0
    %418 = vmatprep.mubr.f32.mxu0 0.0
    %419 = vmatmul.mubr.f32.gmra.mrb[0].mxu0 %v352
    %v420 = vpop.f32.mrb[0].mxu0
    %v421 = vadd.f32 0.0, %v420
    %v422 = vpop.f32.mrb[0].mxu0
    %423 = vdwg.mxu0
    %v424 = vadd.f32 %v348, %v421
    %v425 = vmul.f32 %v424, 0.5
    %v426 = vtanh.pop %v425
    %v427 = vadd.f32 %v426, 1.0
    %v428 = vmul.f32 %v427, 0.5
    %v429 = vtanh.pop %v424
    %v430 = vmul.f32 %v428, %v340
    %432 = vrot.lane.b32.xlu0 %v429, 64
    %v433 = vpop.permute.xlu0 %432
    %v435 = vmul.f32 %v428, %v433
    %437 = vrot.lane.b32.xlu0 %v435, 32
    %v438 = vpop.permute.xlu0 %437
    %v440 = vadd.f32 %v430, %v438
    %v441 = vtanh.pop %v440
    %443 = vrot.lane.b32.xlu0 %v441, 64
    %v444 = vpop.permute.xlu0 %443
    %v446 = vmul.f32 %v428, %v444
    %s447 = scalar_lea.vmem [#allocation4], 32
    %v448 = vld [vmem:[%s447] sm:$0xff]
    %450 = vrot.lane.b32.xlu0 %v446, 32
    %v451 = vpop.permute.xlu0 %450
    %v452 = vsel %vm46, %v451, 0
    %454 = vmatprep.subr.mxu0 0.0
    %455 = vmatpush1.msra.mxu0 %v42
    %456 = vmatprep.subr.mxu0 0.0
    %457 = vmatpush1.msra.mxu0 %v43
    %458 = vmatprep.subr.mxu0 0.0
    %459 = vmatpush1.msra.mxu0 %v44
    %460 = vmatprep.subr.mxu0 0.0
    %461 = vmatpush1.msra.mxu0 %v45
    %462 = vmatprep.subr.mxu0 0.0
    %463 = vmatpush1.msra.mxu0 0.0
    %464 = vmatprep.subr.mxu0 0.0
    %465 = vmatpush1.msra.mxu0 0.0
    %466 = vmatprep.subr.mxu0 0.0
    %467 = vmatpush1.msra.mxu0 0.0
    %468 = vmatprep.subr.mxu0 0.0
    %469 = vmatpush1.msra.mxu0 0.0
    %470 = vmatprep.subr.mxu0 0.0
    %471 = vmatpush1.msra.mxu0 0.0
    %472 = vmatprep.subr.mxu0 0.0
    %473 = vmatpush1.msra.mxu0 0.0
    %474 = vmatprep.subr.mxu0 0.0
    %475 = vmatpush1.msra.mxu0 0.0
    %476 = vmatprep.subr.mxu0 0.0
    %477 = vmatpush1.msra.mxu0 0.0
    %478 = vmatprep.subr.mxu0 0.0
    %479 = vmatpush1.msra.mxu0 0.0
    %480 = vmatprep.subr.mxu0 0.0
    %481 = vmatpush1.msra.mxu0 0.0
    %482 = vmatprep.subr.mxu0 0.0
    %483 = vmatpush1.msra.mxu0 0.0
    %484 = vmatprep.subr.mxu0 0.0
    %485 = vmatpush1.msra.mxu0 0.0
    %486 = vmatprep.subr.mxu0 0.0
    %487 = vmatpush1.msra.mxu0 0.0
    %488 = vmatprep.subr.mxu0 0.0
    %489 = vmatpush1.msra.mxu0 0.0
    %490 = vmatprep.subr.mxu0 0.0
    %491 = vmatpush1.msra.mxu0 0.0
    %492 = vmatprep.subr.mxu0 0.0
    %493 = vmatpush1.msra.mxu0 0.0
    %494 = vmatprep.subr.mxu0 0.0
    %495 = vmatpush1.msra.mxu0 0.0
    %496 = vmatprep.subr.mxu0 0.0
    %497 = vmatpush1.msra.mxu0 0.0
    %498 = vmatprep.subr.mxu0 0.0
    %499 = vmatpush1.msra.mxu0 0.0
    %500 = vmatprep.subr.mxu0 0.0
    %501 = vmatpush1.msra.mxu0 0.0
    %502 = vmatprep.subr.mxu0 0.0
    %503 = vmatpush1.msra.mxu0 0.0
    %504 = vmatprep.subr.mxu0 0.0
    %505 = vmatpush1.msra.mxu0 0.0
    %506 = vmatprep.subr.mxu0 0.0
    %507 = vmatpush1.msra.mxu0 0.0
    %508 = vmatprep.subr.mxu0 0.0
    %509 = vmatpush1.msra.mxu0 0.0
    %510 = vmatprep.subr.mxu0 0.0
    %511 = vmatpush1.msra.mxu0 0.0
    %512 = vmatprep.subr.mxu0 0.0
    %513 = vmatpush1.msra.mxu0 0.0
    %514 = vmatprep.subr.mxu0 0.0
    %515 = vmatpush1.msra.mxu0 0.0
    %516 = vmatprep.subr.mxu0 0.0
    %517 = vmatpush1.msra.mxu0 0.0
    %518 = vmatprep.mubr.f32.mxu0 0.0
    %519 = vmatmul.mubr.f32.gmra.mrb[0].mxu0 %v452
    %v520 = vpop.f32.mrb[0].mxu0
    %v521 = vadd.f32 0.0, %v520
    %v522 = vpop.f32.mrb[0].mxu0
    %523 = vdwg.mxu0
    %v524 = vadd.f32 %v448, %v521
    %v525 = vmul.f32 %v524, 0.5
    %v526 = vtanh.pop %v525
    %v527 = vadd.f32 %v526, 1.0
    %v528 = vmul.f32 %v527, 0.5
    %v529 = vtanh.pop %v524
    %v530 = vmul.f32 %v528, %v440
    %532 = vrot.lane.b32.xlu0 %v529, 64
    %v533 = vpop.permute.xlu0 %532
    %v535 = vmul.f32 %v528, %v533
    %537 = vrot.lane.b32.xlu0 %v535, 32
    %v538 = vpop.permute.xlu0 %537
    %v540 = vadd.f32 %v530, %v538
    %v541 = vtanh.pop %v540
    %543 = vrot.lane.b32.xlu0 %v541, 64
    %v544 = vpop.permute.xlu0 %543
    %v546 = vmul.f32 %v528, %v544
    %s547 = scalar_lea.vmem [#allocation4], 40
    %v548 = vld [vmem:[%s547] sm:$0xff]
    %550 = vrot.lane.b32.xlu0 %v546, 32
    %v551 = vpop.permute.xlu0 %550
    %v552 = vsel %vm46, %v551, 0
    %554 = vmatprep.subr.mxu0 0.0
    %555 = vmatpush1.msra.mxu0 %v42
    %556 = vmatprep.subr.mxu0 0.0
    %557 = vmatpush1.msra.mxu0 %v43
    %558 = vmatprep.subr.mxu0 0.0
    %559 = vmatpush1.msra.mxu0 %v44
    %560 = vmatprep.subr.mxu0 0.0
    %561 = vmatpush1.msra.mxu0 %v45
    %562 = vmatprep.subr.mxu0 0.0
    %563 = vmatpush1.msra.mxu0 0.0
    %564 = vmatprep.subr.mxu0 0.0
    %565 = vmatpush1.msra.mxu0 0.0
    %566 = vmatprep.subr.mxu0 0.0
    %567 = vmatpush1.msra.mxu0 0.0
    %568 = vmatprep.subr.mxu0 0.0
    %569 = vmatpush1.msra.mxu0 0.0
    %570 = vmatprep.subr.mxu0 0.0
    %571 = vmatpush1.msra.mxu0 0.0
    %572 = vmatprep.subr.mxu0 0.0
    %573 = vmatpush1.msra.mxu0 0.0
    %574 = vmatprep.subr.mxu0 0.0
    %575 = vmatpush1.msra.mxu0 0.0
    %576 = vmatprep.subr.mxu0 0.0
    %577 = vmatpush1.msra.mxu0 0.0
    %578 = vmatprep.subr.mxu0 0.0
    %579 = vmatpush1.msra.mxu0 0.0
    %580 = vmatprep.subr.mxu0 0.0
    %581 = vmatpush1.msra.mxu0 0.0
    %582 = vmatprep.subr.mxu0 0.0
    %583 = vmatpush1.msra.mxu0 0.0
    %584 = vmatprep.subr.mxu0 0.0
    %585 = vmatpush1.msra.mxu0 0.0
    %586 = vmatprep.subr.mxu0 0.0
    %587 = vmatpush1.msra.mxu0 0.0
    %588 = vmatprep.subr.mxu0 0.0
    %589 = vmatpush1.msra.mxu0 0.0
    %590 = vmatprep.subr.mxu0 0.0
    %591 = vmatpush1.msra.mxu0 0.0
    %592 = vmatprep.subr.mxu0 0.0
    %593 = vmatpush1.msra.mxu0 0.0
    %594 = vmatprep.subr.mxu0 0.0
    %595 = vmatpush1.msra.mxu0 0.0
    %596 = vmatprep.subr.mxu0 0.0
    %597 = vmatpush1.msra.mxu0 0.0
    %598 = vmatprep.subr.mxu0 0.0
    %599 = vmatpush1.msra.mxu0 0.0
    %600 = vmatprep.subr.mxu0 0.0
    %601 = vmatpush1.msra.mxu0 0.0
    %602 = vmatprep.subr.mxu0 0.0
    %603 = vmatpush1.msra.mxu0 0.0
    %604 = vmatprep.subr.mxu0 0.0
    %605 = vmatpush1.msra.mxu0 0.0
    %606 = vmatprep.subr.mxu0 0.0
    %607 = vmatpush1.msra.mxu0 0.0
    %608 = vmatprep.subr.mxu0 0.0
    %609 = vmatpush1.msra.mxu0 0.0
    %610 = vmatprep.subr.mxu0 0.0
    %611 = vmatpush1.msra.mxu0 0.0
    %612 = vmatprep.subr.mxu0 0.0
    %613 = vmatpush1.msra.mxu0 0.0
    %614 = vmatprep.subr.mxu0 0.0
    %615 = vmatpush1.msra.mxu0 0.0
    %616 = vmatprep.subr.mxu0 0.0
    %617 = vmatpush1.msra.mxu0 0.0
    %618 = vmatprep.mubr.f32.mxu0 0.0
    %619 = vmatmul.mubr.f32.gmra.mrb[0].mxu0 %v552
    %v620 = vpop.f32.mrb[0].mxu0
    %v621 = vadd.f32 0.0, %v620
    %v622 = vpop.f32.mrb[0].mxu0
    %623 = vdwg.mxu0
    %v624 = vadd.f32 %v548, %v621
    %v625 = vmul.f32 %v624, 0.5
    %v626 = vtanh.pop %v625
    %v627 = vadd.f32 %v626, 1.0
    %v628 = vmul.f32 %v627, 0.5
    %v629 = vtanh.pop %v624
    %v630 = vmul.f32 %v628, %v540
    %632 = vrot.lane.b32.xlu0 %v629, 64
    %v633 = vpop.permute.xlu0 %632
    %v635 = vmul.f32 %v628, %v633
    %637 = vrot.lane.b32.xlu0 %v635, 32
    %v638 = vpop.permute.xlu0 %637
    %v640 = vadd.f32 %v630, %v638
    %v641 = vtanh.pop %v640
    %643 = vrot.lane.b32.xlu0 %v641, 64
    %v644 = vpop.permute.xlu0 %643
    %v646 = vmul.f32 %v628, %v644
    %s647 = scalar_lea.vmem [#allocation4], 48
    %v648 = vld [vmem:[%s647] sm:$0xff]
    %650 = vrot.lane.b32.xlu0 %v646, 32
    %v651 = vpop.permute.xlu0 %650
    %v652 = vsel %vm46, %v651, 0
    %654 = vmatprep.subr.mxu0 0.0
    %655 = vmatpush1.msra.mxu0 %v42
    %656 = vmatprep.subr.mxu0 0.0
    %657 = vmatpush1.msra.mxu0 %v43
    %658 = vmatprep.subr.mxu0 0.0
    %659 = vmatpush1.msra.mxu0 %v44
    %660 = vmatprep.subr.mxu0 0.0
    %661 = vmatpush1.msra.mxu0 %v45
    %662 = vmatprep.subr.mxu0 0.0
    %663 = vmatpush1.msra.mxu0 0.0
    %664 = vmatprep.subr.mxu0 0.0
    %665 = vmatpush1.msra.mxu0 0.0
    %666 = vmatprep.subr.mxu0 0.0
    %667 = vmatpush1.msra.mxu0 0.0
    %668 = vmatprep.subr.mxu0 0.0
    %669 = vmatpush1.msra.mxu0 0.0
    %670 = vmatprep.subr.mxu0 0.0
    %671 = vmatpush1.msra.mxu0 0.0
    %672 = vmatprep.subr.mxu0 0.0
    %673 = vmatpush1.msra.mxu0 0.0
    %674 = vmatprep.subr.mxu0 0.0
    %675 = vmatpush1.msra.mxu0 0.0
    %676 = vmatprep.subr.mxu0 0.0
    %677 = vmatpush1.msra.mxu0 0.0
    %678 = vmatprep.subr.mxu0 0.0
    %679 = vmatpush1.msra.mxu0 0.0
    %680 = vmatprep.subr.mxu0 0.0
    %681 = vmatpush1.msra.mxu0 0.0
    %682 = vmatprep.subr.mxu0 0.0
    %683 = vmatpush1.msra.mxu0 0.0
    %684 = vmatprep.subr.mxu0 0.0
    %685 = vmatpush1.msra.mxu0 0.0
    %686 = vmatprep.subr.mxu0 0.0
    %687 = vmatpush1.msra.mxu0 0.0
    %688 = vmatprep.subr.mxu0 0.0
    %689 = vmatpush1.msra.mxu0 0.0
    %690 = vmatprep.subr.mxu0 0.0
    %691 = vmatpush1.msra.mxu0 0.0
    %692 = vmatprep.subr.mxu0 0.0
    %693 = vmatpush1.msra.mxu0 0.0
    %694 = vmatprep.subr.mxu0 0.0
    %695 = vmatpush1.msra.mxu0 0.0
    %696 = vmatprep.subr.mxu0 0.0
    %697 = vmatpush1.msra.mxu0 0.0
    %698 = vmatprep.subr.mxu0 0.0
    %699 = vmatpush1.msra.mxu0 0.0
    %700 = vmatprep.subr.mxu0 0.0
    %701 = vmatpush1.msra.mxu0 0.0
    %702 = vmatprep.subr.mxu0 0.0
    %703 = vmatpush1.msra.mxu0 0.0
    %704 = vmatprep.subr.mxu0 0.0
    %705 = vmatpush1.msra.mxu0 0.0
    %706 = vmatprep.subr.mxu0 0.0
    %707 = vmatpush1.msra.mxu0 0.0
    %708 = vmatprep.subr.mxu0 0.0
    %709 = vmatpush1.msra.mxu0 0.0
    %710 = vmatprep.subr.mxu0 0.0
    %711 = vmatpush1.msra.mxu0 0.0
    %712 = vmatprep.subr.mxu0 0.0
    %713 = vmatpush1.msra.mxu0 0.0
    %714 = vmatprep.subr.mxu0 0.0
    %715 = vmatpush1.msra.mxu0 0.0
    %716 = vmatprep.subr.mxu0 0.0
    %717 = vmatpush1.msra.mxu0 0.0
    %718 = vmatprep.mubr.f32.mxu0 0.0
    %719 = vmatmul.mubr.f32.gmra.mrb[0].mxu0 %v652
    %v720 = vpop.f32.mrb[0].mxu0
    %v721 = vadd.f32 0.0, %v720
    %v722 = vpop.f32.mrb[0].mxu0
    %723 = vdwg.mxu0
    %v724 = vadd.f32 %v648, %v721
    %v725 = vmul.f32 %v724, 0.5
    %v726 = vtanh.pop %v725
    %v727 = vadd.f32 %v726, 1.0
    %v728 = vmul.f32 %v727, 0.5
    %v729 = vtanh.pop %v724
    %v730 = vmul.f32 %v728, %v640
    %732 = vrot.lane.b32.xlu0 %v729, 64
    %v733 = vpop.permute.xlu0 %732
    %v735 = vmul.f32 %v728, %v733
    %737 = vrot.lane.b32.xlu0 %v735, 32
    %v738 = vpop.permute.xlu0 %737
    %v740 = vadd.f32 %v730, %v738
    %v741 = vtanh.pop %v740
    %743 = vrot.lane.b32.xlu0 %v741, 64
    %v744 = vpop.permute.xlu0 %743
    %v746 = vmul.f32 %v728, %v744
    %s747 = scalar_lea.vmem [#allocation4], 56
    %v748 = vld [vmem:[%s747] sm:$0xff]
    %750 = vrot.lane.b32.xlu0 %v746, 32
    %v751 = vpop.permute.xlu0 %750
    %v752 = vsel %vm46, %v751, 0
    %754 = vmatprep.subr.mxu0 0.0
    %755 = vmatpush1.msra.mxu0 %v42
    %756 = vmatprep.subr.mxu0 0.0
    %757 = vmatpush1.msra.mxu0 %v43
    %758 = vmatprep.subr.mxu0 0.0
    %759 = vmatpush1.msra.mxu0 %v44
    %760 = vmatprep.subr.mxu0 0.0
    %761 = vmatpush1.msra.mxu0 %v45
    %762 = vmatprep.subr.mxu0 0.0
    %763 = vmatpush1.msra.mxu0 0.0
    %764 = vmatprep.subr.mxu0 0.0
    %765 = vmatpush1.msra.mxu0 0.0
    %766 = vmatprep.subr.mxu0 0.0
    %767 = vmatpush1.msra.mxu0 0.0
    %768 = vmatprep.subr.mxu0 0.0
    %769 = vmatpush1.msra.mxu0 0.0
    %770 = vmatprep.subr.mxu0 0.0
    %771 = vmatpush1.msra.mxu0 0.0
    %772 = vmatprep.subr.mxu0 0.0
    %773 = vmatpush1.msra.mxu0 0.0
    %774 = vmatprep.subr.mxu0 0.0
    %775 = vmatpush1.msra.mxu0 0.0
    %776 = vmatprep.subr.mxu0 0.0
    %777 = vmatpush1.msra.mxu0 0.0
    %778 = vmatprep.subr.mxu0 0.0
    %779 = vmatpush1.msra.mxu0 0.0
    %780 = vmatprep.subr.mxu0 0.0
    %781 = vmatpush1.msra.mxu0 0.0
    %782 = vmatprep.subr.mxu0 0.0
    %783 = vmatpush1.msra.mxu0 0.0
    %784 = vmatprep.subr.mxu0 0.0
    %785 = vmatpush1.msra.mxu0 0.0
    %786 = vmatprep.subr.mxu0 0.0
    %787 = vmatpush1.msra.mxu0 0.0
    %788 = vmatprep.subr.mxu0 0.0
    %789 = vmatpush1.msra.mxu0 0.0
    %790 = vmatprep.subr.mxu0 0.0
    %791 = vmatpush1.msra.mxu0 0.0
    %792 = vmatprep.subr.mxu0 0.0
    %793 = vmatpush1.msra.mxu0 0.0
    %794 = vmatprep.subr.mxu0 0.0
    %795 = vmatpush1.msra.mxu0 0.0
    %796 = vmatprep.subr.mxu0 0.0
    %797 = vmatpush1.msra.mxu0 0.0
    %798 = vmatprep.subr.mxu0 0.0
    %799 = vmatpush1.msra.mxu0 0.0
    %800 = vmatprep.subr.mxu0 0.0
    %801 = vmatpush1.msra.mxu0 0.0
    %802 = vmatprep.subr.mxu0 0.0
    %803 = vmatpush1.msra.mxu0 0.0
    %804 = vmatprep.subr.mxu0 0.0
    %805 = vmatpush1.msra.mxu0 0.0
    %806 = vmatprep.subr.mxu0 0.0
    %807 = vmatpush1.msra.mxu0 0.0
    %808 = vmatprep.subr.mxu0 0.0
    %809 = vmatpush1.msra.mxu0 0.0
    %810 = vmatprep.subr.mxu0 0.0
    %811 = vmatpush1.msra.mxu0 0.0
    %812 = vmatprep.subr.mxu0 0.0
    %813 = vmatpush1.msra.mxu0 0.0
    %814 = vmatprep.subr.mxu0 0.0
    %815 = vmatpush1.msra.mxu0 0.0
    %816 = vmatprep.subr.mxu0 0.0
    %817 = vmatpush1.msra.mxu0 0.0
    %818 = vmatprep.mubr.f32.mxu0 0.0
    %819 = vmatmul.mubr.f32.gmra.mrb[0].mxu0 %v752
    %v820 = vpop.f32.mrb[0].mxu0
    %v821 = vadd.f32 0.0, %v820
    %v822 = vpop.f32.mrb[0].mxu0
    %823 = vdwg.mxu0
    %v824 = vadd.f32 %v748, %v821
    %v825 = vmul.f32 %v824, 0.5
    %v826 = vtanh.pop %v825
    %v827 = vadd.f32 %v826, 1.0
    %v828 = vmul.f32 %v827, 0.5
    %v829 = vtanh.pop %v824
    %v830 = vmul.f32 %v828, %v740
    %832 = vrot.lane.b32.xlu0 %v829, 64
    %v833 = vpop.permute.xlu0 %832
    %v835 = vmul.f32 %v828, %v833
    %837 = vrot.lane.b32.xlu0 %v835, 32
    %v838 = vpop.permute.xlu0 %837
    %v840 = vadd.f32 %v830, %v838
    %v841 = vtanh.pop %v840
    %843 = vrot.lane.b32.xlu0 %v841, 64
    %v844 = vpop.permute.xlu0 %843
    %v846 = vmul.f32 %v828, %v844
    %848 = vrot.lane.b32.xlu0 %v846, 32
    %v849 = vpop.permute.xlu0 %848
    %851 = vst.msk [vmem:[#allocation2] sm:$0xff] %vm46, %v849
    %853 = vrot.lane.b32.xlu0 %v840, 96
    %v854 = vpop.permute.xlu0 %853
    %856 = vst.msk [vmem:[#allocation3] sm:$0xff] %vm46, %v854
    // Predicated region
    $region26: #{tpu_custom_call.1} parent=1 // pred_check
      %p857 = pneg %p32
    $region27: #{tpu_custom_call.1} parent=1 // pred_check_branch
      %859 = sbr.rel (%p857) target = $region29
    $region28: #{tpu_custom_call.1} parent=1 // pred_region
      %v860 = vld [vmem:[%s2] sm:$0xff]
      %v861 = vld [vmem:[%s2 + $0x8] sm:$0xff]
      %v862 = vld [vmem:[%s2 + $0x10] sm:$0xff]
      %v863 = vld [vmem:[%s2 + $0x18] sm:$0xff]
      %v864 = vld [vmem:[%s3] sm:$0x1]
      %v866 = vlaneseq
      %v867 = vshrl.u32 %v866, 7
      %v868 = vsub.s32 0, %v867
      %v869 = vrot.slane %v864, %v868
      %v871 = vsel %vm46, %v849, 0
      %873 = vmatprep.subr.mxu0 0.0
      %874 = vmatpush1.msra.mxu0 %v860
      %875 = vmatprep.subr.mxu0 0.0
      %876 = vmatpush1.msra.mxu0 %v861
      %877 = vmatprep.subr.mxu0 0.0
      %878 = vmatpush1.msra.mxu0 %v862
      %879 = vmatprep.subr.mxu0 0.0
      %880 = vmatpush1.msra.mxu0 %v863
      %881 = vmatprep.subr.mxu0 0.0
      %882 = vmatpush1.msra.mxu0 0.0
      %883 = vmatprep.subr.mxu0 0.0
      %884 = vmatpush1.msra.mxu0 0.0
      %885 = vmatprep.subr.mxu0 0.0
      %886 = vmatpush1.msra.mxu0 0.0
      %887 = vmatprep.subr.mxu0 0.0
      %888 = vmatpush1.msra.mxu0 0.0
      %889 = vmatprep.subr.mxu0 0.0
      %890 = vmatpush1.msra.mxu0 0.0
      %891 = vmatprep.subr.mxu0 0.0
      %892 = vmatpush1.msra.mxu0 0.0
      %893 = vmatprep.subr.mxu0 0.0
      %894 = vmatpush1.msra.mxu0 0.0
      %895 = vmatprep.subr.mxu0 0.0
      %896 = vmatpush1.msra.mxu0 0.0
      %897 = vmatprep.subr.mxu0 0.0
      %898 = vmatpush1.msra.mxu0 0.0
      %899 = vmatprep.subr.mxu0 0.0
      %900 = vmatpush1.msra.mxu0 0.0
      %901 = vmatprep.subr.mxu0 0.0
      %902 = vmatpush1.msra.mxu0 0.0
      %903 = vmatprep.subr.mxu0 0.0
      %904 = vmatpush1.msra.mxu0 0.0
      %905 = vmatprep.subr.mxu0 0.0
      %906 = vmatpush1.msra.mxu0 0.0
      %907 = vmatprep.subr.mxu0 0.0
      %908 = vmatpush1.msra.mxu0 0.0
      %909 = vmatprep.subr.mxu0 0.0
      %910 = vmatpush1.msra.mxu0 0.0
      %911 = vmatprep.subr.mxu0 0.0
      %912 = vmatpush1.msra.mxu0 0.0
      %913 = vmatprep.subr.mxu0 0.0
      %914 = vmatpush1.msra.mxu0 0.0
      %915 = vmatprep.subr.mxu0 0.0
      %916 = vmatpush1.msra.mxu0 0.0
      %917 = vmatprep.subr.mxu0 0.0
      %918 = vmatpush1.msra.mxu0 0.0
      %919 = vmatprep.subr.mxu0 0.0
      %920 = vmatpush1.msra.mxu0 0.0
      %921 = vmatprep.subr.mxu0 0.0
      %922 = vmatpush1.msra.mxu0 0.0
      %923 = vmatprep.subr.mxu0 0.0
      %924 = vmatpush1.msra.mxu0 0.0
      %925 = vmatprep.subr.mxu0 0.0
      %926 = vmatpush1.msra.mxu0 0.0
      %927 = vmatprep.subr.mxu0 0.0
      %928 = vmatpush1.msra.mxu0 0.0
      %929 = vmatprep.subr.mxu0 0.0
      %930 = vmatpush1.msra.mxu0 0.0
      %931 = vmatprep.subr.mxu0 0.0
      %932 = vmatpush1.msra.mxu0 0.0
      %933 = vmatprep.subr.mxu0 0.0
      %934 = vmatpush1.msra.mxu0 0.0
      %935 = vmatprep.subr.mxu0 0.0
      %936 = vmatpush1.msra.mxu0 0.0
      %937 = vmatprep.mubr.f32.mxu0 0.0
      %938 = vmatmul.mubr.f32.gmra.mrb[0].mxu0 %v871
      %v939 = vpop.f32.mrb[0].mxu0
      %v940 = vadd.f32 %v869, %v939
      %v941 = vpop.f32.mrb[0].mxu0
      %942 = vdwg.mxu0
      %vm943 = vcmask 64512
      %944 = vst.msk [vmem:[#allocation7] sm:$0xff] %vm943, %v940
    $region29: #{tpu_custom_call.1} parent=1 // pred_fallthru
      _
    // Predicated region
    $region30: #{tpu_custom_call.1} parent=1 // pred_check
      _
    $region31: #{tpu_custom_call.1} parent=1 // pred_check_branch
      %946 = sbr.rel (0) target = $region33
    $region32: #{tpu_custom_call.1} parent=1 // pred_region
      %s948 = ssub.s32 128, 128
      %949 = vsyncadd [#allocation6], %s948
      %s951 = sshll.u32 [#allocation7], 4
      %s952 = int_to_ptr.vmem [resolvable:$true] %s951
      %954 = dma.vmem_to_hbm [thread:$0]  %s952, 128, %s4, [#allocation6]
    $region33: #{tpu_custom_call.1} parent=1 // pred_fallthru
      _
    // Predicated region
    $region34: #{tpu_custom_call.1} parent=1 // pred_check
      _
    $region35: #{tpu_custom_call.1} parent=1 // pred_check_branch
      %956 = sbr.rel (0) target = $region37
    $region36: #{tpu_custom_call.1} parent=1 // pred_region
      %957 = dma.done [#allocation6], 128
    $region37: #{tpu_custom_call.1} parent=1 // pred_fallthru
      _
    %958 = vsyncpa [#allocation5], 1
    %959 = vsyncpa [#allocation6], 1

</llo_original>
